<compile_context>
chip_gen: v7x
topology: tpu7x:2x2x1
jax: 0.10.0
libtpu: 0.0.40
codegen_flags: <defaults>
</compile_context>

<pallas_src>
import functools

import jax
import jax.numpy as jnp
from jax.experimental import pallas as pl
from jax.experimental.pallas import tpu as pltpu


# -----------------------------------------------------------------------------
# Pallas kernel: nb batch elements per grid step, 2 + kt matmuls, one store.
# -----------------------------------------------------------------------------
def st_gcn_kernel(x_ref, wgcn_ref, bgcn_ref, wres_ref, wt_ref, bpost_ref, o_ref,
                  *, kt, pad, negative_slope):
    nb, T, V, Cin = x_ref.shape
    Cout = wres_ref.shape[1]

    xb = x_ref[...]                                        # (nb, T, V, Cin) bf16

    # (a) ConvTemporalGraphical with A folded into the 1x1 weight: one matmul
    #     over (joint, in-channel); rows = (n, t), lanes = (w, cout).
    x_vc = xb.reshape(nb * T, V * Cin)
    gcn = jnp.dot(x_vc, wgcn_ref[...], preferred_element_type=jnp.float32)
    gcn = gcn + bgcn_ref[...]                              # (nb*T, V*Cout) f32

    # (b) residual spectral-normed 1x1 conv, per-joint (no block-diag weight):
    #     rows = (n, t, v), contraction = Cin; residual + tcn biases folded.
    x_j = xb.reshape(nb * T * V, Cin)
    acc = jnp.dot(x_j, wres_ref[...], preferred_element_type=jnp.float32)
    acc = acc + bpost_ref[...]                             # (nb*T*V, Cout) f32

    # (c) temporal (kt, 1) conv in kt-accumulate form: zero-pad T (an outer
    #     dim, so the per-tap slices stay sublane-aligned), then kt per-joint
    #     matmuls accumulating into `acc` — no kt-wide im2col buffer is live.
    gcn_j = gcn.reshape(nb, T, V, Cout).astype(xb.dtype)   # bf16 for the MXU
    if pad > 0:
        z = jnp.zeros((nb, pad, V, Cout), gcn_j.dtype)
        gcn_p = jnp.concatenate([z, gcn_j, z], axis=1)     # (nb, T+2*pad, V, Cout)
    else:
        gcn_p = gcn_j
    for dt in range(kt):                                   # kt is small & static
        tap = gcn_p[:, dt:dt + T].reshape(nb * T * V, Cout)
        acc = acc + jnp.dot(tap, wt_ref[dt],
                            preferred_element_type=jnp.float32)

    # (d) LeakyReLU(0.2) in f32; (e) single store in the natural layout
    #     (rows (n, t, v), lane = Cout) — no in-kernel transpose.
    y = jnp.where(acc >= 0, acc, negative_slope * acc)
    o_ref[...] = y.reshape(nb, T * V, Cout)


# -----------------------------------------------------------------------------
# Host wrapper: generation-aware tiling + pallas_call
# -----------------------------------------------------------------------------
def _vmem_capacity_bytes():
    get_info = getattr(pltpu, "get_tpu_info", None)
    if get_info is not None:
        try:
            cap = getattr(get_info(), "vmem_capacity_bytes", None)
            if cap:
                return int(cap)
        except Exception:
            pass
    return 64 << 20   # conservative fallback: v7x per-TensorCore VMEM


def _pick_batch_block(N, T, V, Cin, Cout, kt, weight_bytes, vmem_limit_bytes,
                      min_grid_steps=2):
    """Largest nb dividing N whose working set fits the VMEM budget, while
    keeping >= min_grid_steps 'parallel' grid steps (v7x has 2 TensorCores and
    >=2 steps also lets the batch-block DMA double-buffer)."""
    pad = (kt - 1) // 2
    cb, ab = 2, 4                        # bf16 compute inputs / f32 accumulators
    tv = T * V
    per_b = (tv * Cin * (cb + cb)                          # x block + per-joint view
             + tv * Cout * (ab                             # gcn (f32)
                            + cb * (T + 2 * pad) / T       # padded bf16 gcn
                            + cb                           # current tap view
                            + ab                           # accumulator
                            + ab))                         # activated output block
    per_b = per_b * 1.5                                    # headroom for relayouts
    io_per_b = 2 * (tv * Cin * cb + tv * Cout * ab)        # double-buffered DMA blocks
    budget = 0.7 * vmem_limit_bytes - 2 * weight_bytes     # weights counted 2-buffered
    nb = int(max(1, min(N, budget // max(per_b + io_per_b, 1.0))))
    while N % nb:
        nb -= 1
    if N >= min_grid_steps and N // nb < min_grid_steps:
        nb = max(1, N // min_grid_steps)
        while N % nb:
            nb -= 1
    return nb


@jax.jit
def st_gcn_forward(x_nchw, A, wgcn, bgcn, wres, wt, bpost):
    """Module-equivalent forward. x_nchw: (N, Cin, T, V) f32 -> ((N, Cout, T, V), A)."""
    N, Cin, T, V = x_nchw.shape
    VCout = wgcn.shape[1]
    Cout = VCout // V
    kt = wt.shape[0]
    pad = (kt - 1) // 2

    # NCHW -> (N, T, V, Cin) in bf16 (one fused XLA pass; bf16 halves the
    # kernel's input HBM traffic).  TODO(synk): take NTVC input directly from
    # the producer to drop this boundary transpose entirely.
    x_tvc = jnp.transpose(x_nchw, (0, 2, 3, 1)).astype(jnp.bfloat16)

    vmem_cap = _vmem_capacity_bytes()
    vmem_limit = int(min(vmem_cap // 2, 64 << 20))
    weight_bytes = (wgcn.size * 2 + wres.size * 2 + wt.size * 2
                    + bgcn.size * 4 + bpost.size * 4)
    nb = _pick_batch_block(N, T, V, Cin, Cout, kt, weight_bytes, vmem_limit)

    kernel = functools.partial(st_gcn_kernel, kt=kt, pad=pad,
                               negative_slope=0.2)

    out = pl.pallas_call(
        kernel,
        out_shape=jax.ShapeDtypeStruct((N, T * V, Cout), jnp.float32),
        grid_spec=pltpu.PrefetchScalarGridSpec(
            num_scalar_prefetch=0,
            grid=(N // nb,),
            in_specs=[
                pl.BlockSpec((nb, T, V, Cin), lambda i: (i, 0, 0, 0)),   # x block
                # weights / biases: constant index_map -> resident across steps
                pl.BlockSpec((V * Cin, VCout), lambda i: (0, 0)),        # gcn W (A folded)
                pl.BlockSpec((1, VCout), lambda i: (0, 0)),              # gcn bias (A folded)
                pl.BlockSpec((Cin, Cout), lambda i: (0, 0)),             # residual W (per-joint)
                pl.BlockSpec((kt, Cout, Cout), lambda i: (0, 0, 0)),     # tcn W (per-tap)
                pl.BlockSpec((1, Cout), lambda i: (0, 0)),               # residual+tcn bias
            ],
            out_specs=pl.BlockSpec((nb, T * V, Cout), lambda i: (i, 0, 0)),
        ),
        compiler_params=pltpu.CompilerParams(
            dimension_semantics=("parallel",),
            vmem_limit_bytes=vmem_limit),
    )(x_tvc, wgcn, bgcn, wres, wt, bpost)

    # natural (N, T, V, Cout) -> module-equivalent NCHW (outside the kernel).
    out_nchw = jnp.transpose(out.reshape(N, T, V, Cout), (0, 3, 1, 2))
    return out_nchw, A


# -----------------------------------------------------------------------------
# Parameter setup / host-side weight fusion (plain JAX, done once)
# -----------------------------------------------------------------------------
def spectral_normalize(w, n_iter=30):
    """Approximate nn.utils.spectral_norm: divide the conv weight (O, I, kh, kw)
    by the largest singular value of its (O, I*kh*kw) matricization."""
    wm = w.reshape(w.shape[0], -1)
    u = jnp.ones((wm.shape[0],), w.dtype) / jnp.sqrt(float(wm.shape[0]))
    for _ in range(n_iter):
        v = wm.T @ u
        v = v / (jnp.linalg.norm(v) + 1e-12)
        u = wm @ v
        u = u / (jnp.linalg.norm(u) + 1e-12)
    sigma = u @ (wm @ v)
    return w / sigma


def init_params(key, Cin, Cout, K, kt):
    ks = jax.random.split(key, 6)
    Wg = 0.1 * jax.random.normal(ks[0], (K * Cout, Cin, 1, 1), jnp.float32)
    bg = 0.1 * jax.random.normal(ks[1], (K * Cout,), jnp.float32)
    Wt = 0.1 * jax.random.normal(ks[2], (Cout, Cout, kt, 1), jnp.float32)
    bt = 0.1 * jax.random.normal(ks[3], (Cout,), jnp.float32)
    Wr = 0.1 * jax.random.normal(ks[4], (Cout, Cin, 1, 1), jnp.float32)
    br = 0.1 * jax.random.normal(ks[5], (Cout,), jnp.float32)
    # spectral norm applied to the tcn and residual convs (as in the module)
    Wt = spectral_normalize(Wt)
    Wr = spectral_normalize(Wr)
    return Wg, bg, Wt, bt, Wr, br


def fuse_params(A, Wg, bg, Wt, bt, Wr, br):
    """Fold A / temporal taps / biases into matmul-ready weights (host side).
    MXU operands are emitted in bf16; biases stay f32."""
    K, V, _ = A.shape
    Cin = Wg.shape[1]
    Cout = Wt.shape[0]
    hp = jax.lax.Precision.HIGHEST

    wg = Wg[:, :, 0, 0].reshape(K, Cout, Cin)                 # (K, Cout, Cin)
    # GCN 1x1 weight with A folded in: rows (v, cin), cols (w, cout).
    wgcn = jnp.einsum('koc,kvw->vcwo', wg, A,
                      precision=hp).reshape(V * Cin, V * Cout)
    # GCN bias propagated through the A contraction.
    bgcn = jnp.einsum('ko,kw->wo', bg.reshape(K, Cout), A.sum(axis=1),
                      precision=hp).reshape(1, V * Cout)
    # residual 1x1 conv, per-joint: (Cin, Cout)
    wres = Wr[:, :, 0, 0].T
    # temporal conv, per-tap per-joint: wt[dt, c_in, c_out] = Wt[c_out, c_in, dt]
    wt = jnp.transpose(Wt[:, :, :, 0], (2, 1, 0))             # (kt, Cout, Cout)
    # residual bias + temporal-conv bias folded into one post-sum bias.
    bpost = (br + bt).reshape(1, Cout)
    return (wgcn.astype(jnp.bfloat16), bgcn.astype(jnp.float32),
            wres.astype(jnp.bfloat16), wt.astype(jnp.bfloat16),
            bpost.astype(jnp.float32))


# -----------------------------------------------------------------------------
# Pure-JAX reference mirroring the PyTorch forward (correctness check)
# -----------------------------------------------------------------------------
def reference_forward(x, A, Wg, bg, Wt, bt, Wr, br):
    N, Cin, T, V = x.shape
    K = A.shape[0]
    Cout = Wt.shape[0]
    kt = Wt.shape[2]
    pad = (kt - 1) // 2
    hp = jax.lax.Precision.HIGHEST

    res = jnp.einsum('nctv,oc->notv', x, Wr[:, :, 0, 0], precision=hp)
    res = res + br[None, :, None, None]

    g = jnp.einsum('nctv,oc->notv', x, Wg[:, :, 0, 0], precision=hp)
    g = g + bg[None, :, None, None]
    g = g.reshape(N, K, Cout, T, V)
    g = jnp.einsum('nkctv,kvw->nctw', g, A, precision=hp)

    gp = jnp.pad(g, ((0, 0), (0, 0), (pad, pad), (0, 0)))
    t = jnp.zeros((N, Cout, T, V), jnp.float32)
    for dt in range(kt):
        t = t + jnp.einsum('nctv,oc->notv', gp[:, :, dt:dt + T, :],
                           Wt[:, :, dt, 0], precision=hp)
    t = t + bt[None, :, None, None]

    y = t + res
    y = jnp.where(y >= 0, y, 0.2 * y)
    return y, A


# -----------------------------------------------------------------------------
if __name__ == "__main__":
    # small shapes: batch=2, in_channels=4, out_channels=8, T=16 frames,
    # V=8 joints, K=2 adjacency matrices, temporal kernel kt=3, stride=1.
    N, Cin, Cout, T, V, K, kt = 2, 4, 8, 16, 8, 2, 3

    key = jax.random.PRNGKey(0)
    kx, ka, kp = jax.random.split(key, 3)
    x = jax.random.normal(kx, (N, Cin, T, V), jnp.float32)      # NCHW like PyTorch
    A = jax.random.normal(ka, (K, V, V), jnp.float32)

    Wg, bg, Wt, bt, Wr, br = init_params(kp, Cin, Cout, K, kt)
    wgcn, bgcn, wres, wt, bpost = fuse_params(A, Wg, bg, Wt, bt, Wr, br)

    out, A_out = st_gcn_forward(x, A, wgcn, bgcn, wres, wt, bpost)
    out = jax.block_until_ready(out)

    ref, _ = reference_forward(x, A, Wg, bg, Wt, bt, Wr, br)
    assert out.shape == (N, Cout, T, V)
    max_err = float(jnp.max(jnp.abs(out - ref)))
    # bf16 MXU inputs vs. f32 HIGHEST reference -> loose but meaningful tolerance
    assert jnp.allclose(out, ref, atol=5e-2, rtol=5e-2), max_err
    assert jnp.array_equal(A_out, A)

    print("KERNEL_OK")
</pallas_src>

<mosaic_0001>
module attributes {stable_mosaic.version = 11 : i64} {
  func.func @st_gcn_kernel(%arg0: i32, %arg1: memref<1x16x8x4xbf16, #tpu.memory_space<vmem>>, %arg2: memref<32x64xbf16, #tpu.memory_space<vmem>>, %arg3: memref<1x64xf32, #tpu.memory_space<vmem>>, %arg4: memref<4x8xbf16, #tpu.memory_space<vmem>>, %arg5: memref<3x8x8xbf16, #tpu.memory_space<vmem>>, %arg6: memref<1x8xf32, #tpu.memory_space<vmem>>, %arg7: memref<1x128x8xf32, #tpu.memory_space<vmem>>) attributes {dimension_semantics = [#tpu.dimension_semantics<parallel>], iteration_bounds = array<i64: 2>, scalar_prefetch = 0 : i64, scratch_operands = 0 : i64, tpu.core_type = #tpu.core_type<tc>, window_params = [{transform_indices = @transform_0, window_bounds = array<i64: 1, 16, 8, 4>}, {pipeline_mode = #tpu.pipeline_mode<synchronous>, transform_indices = @transform_1, window_bounds = array<i64: 32, 64>}, {pipeline_mode = #tpu.pipeline_mode<synchronous>, transform_indices = @transform_2, window_bounds = array<i64: 1, 64>}, {pipeline_mode = #tpu.pipeline_mode<synchronous>, transform_indices = @transform_3, window_bounds = array<i64: 4, 8>}, {pipeline_mode = #tpu.pipeline_mode<synchronous>, transform_indices = @transform_4, window_bounds = array<i64: 3, 8, 8>}, {pipeline_mode = #tpu.pipeline_mode<synchronous>, transform_indices = @transform_5, window_bounds = array<i64: 1, 8>}, {transform_indices = @transform_6, window_bounds = array<i64: 1, 128, 8>}]} {
    %c0 = arith.constant 0 : index
    %c0_0 = arith.constant 0 : index
    %c0_1 = arith.constant 0 : index
    %c0_2 = arith.constant 0 : index
    %0 = vector.load %arg1[%c0, %c0_0, %c0_1, %c0_2] : memref<1x16x8x4xbf16, #tpu.memory_space<vmem>>, vector<1x16x8x4xbf16>
    %1 = vector.shape_cast %0 : vector<1x16x8x4xbf16> to vector<16x32xbf16>
    %c0_3 = arith.constant 0 : index
    %c0_4 = arith.constant 0 : index
    %2 = vector.load %arg2[%c0_3, %c0_4] : memref<32x64xbf16, #tpu.memory_space<vmem>>, vector<32x64xbf16>
    %cst = arith.constant dense<0.000000e+00> : vector<16x64xf32>
    %3 = tpu.matmul %1, %2, %cst {dimension_numbers = #tpu.dot_dimension_numbers<[1], [0], [0], [1], [0, 0, 1, 1], [], []>} : vector<16x32xbf16>, vector<32x64xbf16>, vector<16x64xf32> -> vector<16x64xf32>
    %c0_5 = arith.constant 0 : index
    %c0_6 = arith.constant 0 : index
    %4 = vector.load %arg3[%c0_5, %c0_6] : memref<1x64xf32, #tpu.memory_space<vmem>>, vector<1x64xf32>
    %5 = vector.broadcast %4 : vector<1x64xf32> to vector<16x64xf32>
    %6 = arith.addf %3, %5 : vector<16x64xf32>
    %7 = vector.shape_cast %0 : vector<1x16x8x4xbf16> to vector<128x4xbf16>
    %c0_7 = arith.constant 0 : index
    %c0_8 = arith.constant 0 : index
    %8 = vector.load %arg4[%c0_7, %c0_8] : memref<4x8xbf16, #tpu.memory_space<vmem>>, vector<4x8xbf16>
    %cst_9 = arith.constant dense<0.000000e+00> : vector<128x8xf32>
    %9 = tpu.matmul %7, %8, %cst_9 {dimension_numbers = #tpu.dot_dimension_numbers<[1], [0], [0], [1], [0, 0, 1, 1], [], []>} : vector<128x4xbf16>, vector<4x8xbf16>, vector<128x8xf32> -> vector<128x8xf32>
    %c0_10 = arith.constant 0 : index
    %c0_11 = arith.constant 0 : index
    %10 = vector.load %arg6[%c0_10, %c0_11] : memref<1x8xf32, #tpu.memory_space<vmem>>, vector<1x8xf32>
    %11 = vector.broadcast %10 : vector<1x8xf32> to vector<128x8xf32>
    %12 = arith.addf %9, %11 : vector<128x8xf32>
    %13 = vector.shape_cast %6 : vector<16x64xf32> to vector<1x16x8x8xf32>
    %14 = arith.truncf %13 : vector<1x16x8x8xf32> to vector<1x16x8x8xbf16>
    %cst_12 = arith.constant 0.000000e+00 : bf16
    %15 = vector.broadcast %cst_12 : bf16 to vector<1x1x8x8xbf16>
    %16 = tpu.concatenate %15, %14, %15 in 1 : vector<1x1x8x8xbf16>, vector<1x16x8x8xbf16>, vector<1x1x8x8xbf16> -> vector<1x18x8x8xbf16>
    %17 = vector.extract_strided_slice %16 {offsets = [0, 0, 0, 0], sizes = [1, 16, 8, 8], strides = [1, 1, 1, 1]} : vector<1x18x8x8xbf16> to vector<1x16x8x8xbf16>
    %18 = vector.shape_cast %17 : vector<1x16x8x8xbf16> to vector<128x8xbf16>
    %c0_13 = arith.constant 0 : index
    %c0_14 = arith.constant 0 : index
    %c0_15 = arith.constant 0 : index
    %19 = vector.load %arg5[%c0_13, %c0_14, %c0_15] : memref<3x8x8xbf16, #tpu.memory_space<vmem>>, vector<1x8x8xbf16>
    %20 = vector.shape_cast %19 : vector<1x8x8xbf16> to vector<8x8xbf16>
    %cst_16 = arith.constant dense<0.000000e+00> : vector<128x8xf32>
    %21 = tpu.matmul %18, %20, %cst_16 {dimension_numbers = #tpu.dot_dimension_numbers<[1], [0], [0], [1], [0, 0, 1, 1], [], []>} : vector<128x8xbf16>, vector<8x8xbf16>, vector<128x8xf32> -> vector<128x8xf32>
    %22 = arith.addf %12, %21 : vector<128x8xf32>
    %23 = vector.extract_strided_slice %16 {offsets = [0, 1, 0, 0], sizes = [1, 16, 8, 8], strides = [1, 1, 1, 1]} : vector<1x18x8x8xbf16> to vector<1x16x8x8xbf16>
    %24 = vector.shape_cast %23 : vector<1x16x8x8xbf16> to vector<128x8xbf16>
    %c1 = arith.constant 1 : index
    %c0_17 = arith.constant 0 : index
    %c0_18 = arith.constant 0 : index
    %25 = vector.load %arg5[%c1, %c0_17, %c0_18] : memref<3x8x8xbf16, #tpu.memory_space<vmem>>, vector<1x8x8xbf16>
    %26 = vector.shape_cast %25 : vector<1x8x8xbf16> to vector<8x8xbf16>
    %cst_19 = arith.constant dense<0.000000e+00> : vector<128x8xf32>
    %27 = tpu.matmul %24, %26, %cst_19 {dimension_numbers = #tpu.dot_dimension_numbers<[1], [0], [0], [1], [0, 0, 1, 1], [], []>} : vector<128x8xbf16>, vector<8x8xbf16>, vector<128x8xf32> -> vector<128x8xf32>
    %28 = arith.addf %22, %27 : vector<128x8xf32>
    %29 = vector.extract_strided_slice %16 {offsets = [0, 2, 0, 0], sizes = [1, 16, 8, 8], strides = [1, 1, 1, 1]} : vector<1x18x8x8xbf16> to vector<1x16x8x8xbf16>
    %30 = vector.shape_cast %29 : vector<1x16x8x8xbf16> to vector<128x8xbf16>
    %c2 = arith.constant 2 : index
    %c0_20 = arith.constant 0 : index
    %c0_21 = arith.constant 0 : index
    %31 = vector.load %arg5[%c2, %c0_20, %c0_21] : memref<3x8x8xbf16, #tpu.memory_space<vmem>>, vector<1x8x8xbf16>
    %32 = vector.shape_cast %31 : vector<1x8x8xbf16> to vector<8x8xbf16>
    %cst_22 = arith.constant dense<0.000000e+00> : vector<128x8xf32>
    %33 = tpu.matmul %30, %32, %cst_22 {dimension_numbers = #tpu.dot_dimension_numbers<[1], [0], [0], [1], [0, 0, 1, 1], [], []>} : vector<128x8xbf16>, vector<8x8xbf16>, vector<128x8xf32> -> vector<128x8xf32>
    %34 = arith.addf %28, %33 : vector<128x8xf32>
    %cst_23 = arith.constant 0.000000e+00 : f32
    %35 = vector.broadcast %cst_23 : f32 to vector<128x8xf32>
    %36 = arith.cmpf oge, %34, %35 : vector<128x8xf32>
    %cst_24 = arith.constant 2.000000e-01 : f32
    %37 = vector.broadcast %cst_24 : f32 to vector<128x8xf32>
    %38 = arith.mulf %37, %34 : vector<128x8xf32>
    %39 = arith.select %36, %34, %38 : vector<128x8xi1>, vector<128x8xf32>
    %40 = vector.shape_cast %39 : vector<128x8xf32> to vector<1x128x8xf32>
    %c0_25 = arith.constant 0 : index
    %c0_26 = arith.constant 0 : index
    %c0_27 = arith.constant 0 : index
    %41 = vector.load %arg7[%c0_25, %c0_26, %c0_27] : memref<1x128x8xf32, #tpu.memory_space<vmem>>, vector<1x128x8xf32>
    tpu.vector_store %arg7[%c0_25, %c0_26, %c0_27], %40 {strides = array<i32>} : memref<1x128x8xf32, #tpu.memory_space<vmem>>, vector<1x128x8xf32>,
    return
  }
  func.func @transform_0(%arg0: i32) -> (i32, i32, i32, i32) {
    %c0_i32 = arith.constant 0 : i32
    %c0_i32_0 = arith.constant 0 : i32
    %c0_i32_1 = arith.constant 0 : i32
    %c0_i32_2 = arith.constant 0 : i32
    return %arg0, %c0_i32, %c0_i32_0, %c0_i32_1 : i32, i32, i32, i32
  }
  func.func @transform_1(%arg0: i32) -> (i32, i32) {
    %c0_i32 = arith.constant 0 : i32
    %c0_i32_0 = arith.constant 0 : i32
    %c0_i32_1 = arith.constant 0 : i32
    return %c0_i32, %c0_i32_0 : i32, i32
  }
  func.func @transform_2(%arg0: i32) -> (i32, i32) {
    %c0_i32 = arith.constant 0 : i32
    %c0_i32_0 = arith.constant 0 : i32
    %c0_i32_1 = arith.constant 0 : i32
    return %c0_i32, %c0_i32_0 : i32, i32
  }
  func.func @transform_3(%arg0: i32) -> (i32, i32) {
    %c0_i32 = arith.constant 0 : i32
    %c0_i32_0 = arith.constant 0 : i32
    %c0_i32_1 = arith.constant 0 : i32
    return %c0_i32, %c0_i32_0 : i32, i32
  }
  func.func @transform_4(%arg0: i32) -> (i32, i32, i32) {
    %c0_i32 = arith.constant 0 : i32
    %c0_i32_0 = arith.constant 0 : i32
    %c0_i32_1 = arith.constant 0 : i32
    %c0_i32_2 = arith.constant 0 : i32
    return %c0_i32, %c0_i32_0, %c0_i32_1 : i32, i32, i32
  }
  func.func @transform_5(%arg0: i32) -> (i32, i32) {
    %c0_i32 = arith.constant 0 : i32
    %c0_i32_0 = arith.constant 0 : i32
    %c0_i32_1 = arith.constant 0 : i32
    return %c0_i32, %c0_i32_0 : i32, i32
  }
  func.func @transform_6(%arg0: i32) -> (i32, i32, i32) {
    %c0_i32 = arith.constant 0 : i32
    %c0_i32_0 = arith.constant 0 : i32
    %c0_i32_1 = arith.constant 0 : i32
    return %arg0, %c0_i32, %c0_i32_0 : i32, i32, i32
  }
}

</mosaic_0001>

<llo_original>
// kernel: st_gcn_forward.1
$region0: #{st_gcn_forward.1}
  #allocation0 [shape = 'u32[]', space=smem, size = 0x4, offset = 0x4, fixed_abs, tag = 'smem constant byte address 0x4 - core index']
  #allocation1 [shape = 'u32[144,128]{1,0:T(1,128)}', space=vmem, size = 0x12000, scoped, tag = 'internal scratch']
  %s0 = inlined_call_operand.vmem [shape: bf16[2,16,8,4], index: 0, kind: input, shape index: {}]
  %s1 = inlined_call_operand.vmem [shape: bf16[32,64], index: 1, kind: input, shape index: {}]
  %s2 = inlined_call_operand.vmem [shape: f32[1,64], index: 2, kind: input, shape index: {}]
  %s3 = inlined_call_operand.vmem [shape: bf16[4,8], index: 3, kind: input, shape index: {}]
  %s4 = inlined_call_operand.vmem [shape: bf16[3,8,8], index: 4, kind: input, shape index: {}]
  %s5 = inlined_call_operand.vmem [shape: f32[1,8], index: 5, kind: input, shape index: {}]
  %s6 = inlined_call_operand.vmem [shape: f32[2,128,8], index: 6, kind: output, shape index: {}]
  %s7 = sld [smem:[#allocation0]]
  $region57: #{st_gcn_forward.1} parent=0
    _
  %s9 = ssub.s32 1, %s7
  %s10 = scalar_select 0, %s9, %s7
  loop: start=0, step=1, limit=4
  $region2: #{st_gcn_forward.1} parent=0 // loop_pre_header
    _
  $region3: #{st_gcn_forward.1} parent=0 // loop_header
    %s12 = sphi 0, %s16
    %p13 = scmp.ge.s32.totalorder %s12, 4
    %s22 = sphi 0, %s24
    %s25 = sphi 0, %s22
    %s26 = sphi 0, %s25
    %s42 = sphi 0, %s26
    %s46 = sphi 0, %s46
    %s48 = sphi 0, %s46
    %s49 = sphi 0, %s48
    %s63 = sphi 0, %s49
    %s67 = sphi 0, %s67
    %s69 = sphi 0, %s67
    %s70 = sphi 0, %s69
    %s84 = sphi 0, %s70
    %s88 = sphi 0, %s88
    %s90 = sphi 0, %s88
    %s91 = sphi 0, %s90
    %s105 = sphi 0, %s91
    %s109 = sphi 0, %s109
    %s111 = sphi 0, %s109
    %s112 = sphi 0, %s111
    %s126 = sphi 0, %s112
    %s130 = sphi 0, %s130
    %s132 = sphi 0, %s130
    %s133 = sphi 0, %s132
    %s147 = sphi 0, %s133
    %s153 = sphi 0, %s155
    %s156 = sphi 0, %s153
    %s157 = sphi 0, %s156
    %s173 = sphi 0, %s157
  $region4: #{st_gcn_forward.1} parent=0 // loop_header_branch
    %15 = sbr.rel (%p13) target = $region8
  $region5: #{st_gcn_forward.1} parent=0 // loop_body
    %s17 = ssub.s32 %s12, 1
    %s18 = ssub.s32 %s12, 2
    %s19 = sadd.s32 %s12, 1
    %s20 = ssub.s32 %s12, %s19
    %p21 = scmp.eq.s32.totalorder %s20, 0
    %s23 = sadd.s32 %s22, 1
    %s24 = scalar_select %p21, %s22, %s23
    %p27 = pneg %p21
    %p28 = scmp.eq.s32.totalorder %s12, 1
    %p29 = por %p27, %p28
    %p30 = scmp.ne.s32.totalorder %s22, %s25
    %p31 = scmp.eq.s32.totalorder %s12, 0
    %p32 = por %p30, %p31
    %p33 = scmp.ne.s32.totalorder %s22, %s25
    %p34 = scmp.eq.s32.totalorder %s17, 1
    %p35 = por %p33, %p34
    %p36 = scmp.ne.s32.totalorder %s25, %s26
    %p37 = scmp.eq.s32.totalorder %s17, 0
    %p38 = por %p36, %p37
    %p39 = scmp.ne.s32.totalorder %s25, %s26
    %p40 = scmp.eq.s32.totalorder %s18, 1
    %p41 = por %p39, %p40
    %p43 = scmp.ne.s32.totalorder %s26, %s42
    %p44 = scmp.eq.s32.totalorder %s18, 0
    %p45 = por %p43, %p44
    %s47 = sadd.s32 %s46, 1
    %p50 = scmp.eq.s32.totalorder %s12, 1
    %p51 = scmp.ne.s32.totalorder %s46, %s48
    %p52 = scmp.eq.s32.totalorder %s12, 0
    %p53 = por %p51, %p52
    %p54 = scmp.ne.s32.totalorder %s46, %s48
    %p55 = scmp.eq.s32.totalorder %s17, 1
    %p56 = por %p54, %p55
    %p57 = scmp.ne.s32.totalorder %s48, %s49
    %p58 = scmp.eq.s32.totalorder %s17, 0
    %p59 = por %p57, %p58
    %p60 = scmp.ne.s32.totalorder %s48, %s49
    %p61 = scmp.eq.s32.totalorder %s18, 1
    %p62 = por %p60, %p61
    %p64 = scmp.ne.s32.totalorder %s49, %s63
    %p65 = scmp.eq.s32.totalorder %s18, 0
    %p66 = por %p64, %p65
    %s68 = sadd.s32 %s67, 1
    %p71 = scmp.eq.s32.totalorder %s12, 1
    %p72 = scmp.ne.s32.totalorder %s67, %s69
    %p73 = scmp.eq.s32.totalorder %s12, 0
    %p74 = por %p72, %p73
    %p75 = scmp.ne.s32.totalorder %s67, %s69
    %p76 = scmp.eq.s32.totalorder %s17, 1
    %p77 = por %p75, %p76
    %p78 = scmp.ne.s32.totalorder %s69, %s70
    %p79 = scmp.eq.s32.totalorder %s17, 0
    %p80 = por %p78, %p79
    %p81 = scmp.ne.s32.totalorder %s69, %s70
    %p82 = scmp.eq.s32.totalorder %s18, 1
    %p83 = por %p81, %p82
    %p85 = scmp.ne.s32.totalorder %s70, %s84
    %p86 = scmp.eq.s32.totalorder %s18, 0
    %p87 = por %p85, %p86
    %s89 = sadd.s32 %s88, 1
    %p92 = scmp.eq.s32.totalorder %s12, 1
    %p93 = scmp.ne.s32.totalorder %s88, %s90
    %p94 = scmp.eq.s32.totalorder %s12, 0
    %p95 = por %p93, %p94
    %p96 = scmp.ne.s32.totalorder %s88, %s90
    %p97 = scmp.eq.s32.totalorder %s17, 1
    %p98 = por %p96, %p97
    %p99 = scmp.ne.s32.totalorder %s90, %s91
    %p100 = scmp.eq.s32.totalorder %s17, 0
    %p101 = por %p99, %p100
    %p102 = scmp.ne.s32.totalorder %s90, %s91
    %p103 = scmp.eq.s32.totalorder %s18, 1
    %p104 = por %p102, %p103
    %p106 = scmp.ne.s32.totalorder %s91, %s105
    %p107 = scmp.eq.s32.totalorder %s18, 0
    %p108 = por %p106, %p107
    %s110 = sadd.s32 %s109, 1
    %p113 = scmp.eq.s32.totalorder %s12, 1
    %p114 = scmp.ne.s32.totalorder %s109, %s111
    %p115 = scmp.eq.s32.totalorder %s12, 0
    %p116 = por %p114, %p115
    %p117 = scmp.ne.s32.totalorder %s109, %s111
    %p118 = scmp.eq.s32.totalorder %s17, 1
    %p119 = por %p117, %p118
    %p120 = scmp.ne.s32.totalorder %s111, %s112
    %p121 = scmp.eq.s32.totalorder %s17, 0
    %p122 = por %p120, %p121
    %p123 = scmp.ne.s32.totalorder %s111, %s112
    %p124 = scmp.eq.s32.totalorder %s18, 1
    %p125 = por %p123, %p124
    %p127 = scmp.ne.s32.totalorder %s112, %s126
    %p128 = scmp.eq.s32.totalorder %s18, 0
    %p129 = por %p127, %p128
    %s131 = sadd.s32 %s130, 1
    %p134 = scmp.eq.s32.totalorder %s12, 1
    %p135 = scmp.ne.s32.totalorder %s130, %s132
    %p136 = scmp.eq.s32.totalorder %s12, 0
    %p137 = por %p135, %p136
    %p138 = scmp.ne.s32.totalorder %s130, %s132
    %p139 = scmp.eq.s32.totalorder %s17, 1
    %p140 = por %p138, %p139
    %p141 = scmp.ne.s32.totalorder %s132, %s133
    %p142 = scmp.eq.s32.totalorder %s17, 0
    %p143 = por %p141, %p142
    %p144 = scmp.ne.s32.totalorder %s132, %s133
    %p145 = scmp.eq.s32.totalorder %s18, 1
    %p146 = por %p144, %p145
    %p148 = scmp.ne.s32.totalorder %s133, %s147
    %p149 = scmp.eq.s32.totalorder %s18, 0
    %p150 = por %p148, %p149
    %s151 = ssub.s32 %s12, %s19
    %p152 = scmp.eq.s32.totalorder %s151, 0
    %s154 = sadd.s32 %s153, 1
    %s155 = scalar_select %p152, %s153, %s154
    %p158 = pneg %p152
    %p159 = scmp.eq.s32.totalorder %s12, 1
    %p160 = por %p158, %p159
    %p161 = scmp.ne.s32.totalorder %s153, %s156
    %p162 = scmp.eq.s32.totalorder %s12, 0
    %p163 = por %p161, %p162
    %p164 = scmp.ne.s32.totalorder %s153, %s156
    %p165 = scmp.eq.s32.totalorder %s17, 1
    %p166 = por %p164, %p165
    %p167 = scmp.ne.s32.totalorder %s156, %s157
    %p168 = scmp.eq.s32.totalorder %s17, 0
    %p169 = por %p167, %p168
    %p170 = scmp.ne.s32.totalorder %s156, %s157
    %p171 = scmp.eq.s32.totalorder %s18, 1
    %p172 = por %p170, %p171
    %p174 = scmp.ne.s32.totalorder %s157, %s173
    %p175 = scmp.eq.s32.totalorder %s18, 0
    %p176 = por %p174, %p175
    %p177 = scmp.le.s32.totalorder 1, %s12
    %p178 = scmp.lt.s32.totalorder %s12, 3
    %p179 = pnand %p177, %p178
    %p180 = pneg %p179
    // Predicated region
    $region9: #{st_gcn_forward.1} parent=5 // pred_check
      _
    $region10: #{st_gcn_forward.1} parent=5 // pred_check_branch
      %182 = sbr.rel (%p179) target = $region12
    $region11: #{st_gcn_forward.1} parent=5 // pred_region
      %s183 = ssub.s32 %s12, 1
      // Predicated region
      $region13: #{st_gcn_forward.1} parent=11 // pred_check
        %p184 = pneg %p59
      $region14: #{st_gcn_forward.1} parent=11 // pred_check_branch
        %186 = sbr.rel (%p184) target = $region16
      $region15: #{st_gcn_forward.1} parent=11 // pred_region
        _
      $region16: #{st_gcn_forward.1} parent=11 // pred_fallthru
        _
      // Predicated region
      $region17: #{st_gcn_forward.1} parent=11 // pred_check
        %p187 = pneg %p80
      $region18: #{st_gcn_forward.1} parent=11 // pred_check_branch
        %189 = sbr.rel (%p187) target = $region20
      $region19: #{st_gcn_forward.1} parent=11 // pred_region
        _
      $region20: #{st_gcn_forward.1} parent=11 // pred_fallthru
        _
      // Predicated region
      $region21: #{st_gcn_forward.1} parent=11 // pred_check
        %p190 = pneg %p101
      $region22: #{st_gcn_forward.1} parent=11 // pred_check_branch
        %192 = sbr.rel (%p190) target = $region24
      $region23: #{st_gcn_forward.1} parent=11 // pred_region
        _
      $region24: #{st_gcn_forward.1} parent=11 // pred_fallthru
        _
      // Predicated region
      $region25: #{st_gcn_forward.1} parent=11 // pred_check
        %p193 = pneg %p122
      $region26: #{st_gcn_forward.1} parent=11 // pred_check_branch
        %195 = sbr.rel (%p193) target = $region28
      $region27: #{st_gcn_forward.1} parent=11 // pred_region
        _
      $region28: #{st_gcn_forward.1} parent=11 // pred_fallthru
        _
      // Predicated region
      $region29: #{st_gcn_forward.1} parent=11 // pred_check
        %p196 = pneg %p143
      $region30: #{st_gcn_forward.1} parent=11 // pred_check_branch
        %198 = sbr.rel (%p196) target = $region32
      $region31: #{st_gcn_forward.1} parent=11 // pred_region
        _
      $region32: #{st_gcn_forward.1} parent=11 // pred_fallthru
        _
    $region12: #{st_gcn_forward.1} parent=5 // pred_fallthru
      _
    %p199 = scmp.lt.s32.totalorder %s12, 2
    // Predicated region
    $region33: #{st_gcn_forward.1} parent=5 // pred_check
      %p200 = pneg %p199
    $region34: #{st_gcn_forward.1} parent=5 // pred_check_branch
      %202 = sbr.rel (%p200) target = $region36
    $region35: #{st_gcn_forward.1} parent=5 // pred_region
      // Predicated region
      $region37: #{st_gcn_forward.1} parent=35 // pred_check
        %p203 = pneg %p32
      $region38: #{st_gcn_forward.1} parent=35 // pred_check_branch
        %205 = sbr.rel (%p203) target = $region40
      $region39: #{st_gcn_forward.1} parent=35 // pred_region
        %p206 = scmp.lt.s32.totalorder %s12, 1
        %s207 = scalar_select %p206, %s12, 1
        %s208 = smul.addr %s207, 16
        %s209 = smul.addr %s208, 4
        %s210 = scalar_lea.vmem %s0, %s209
      $region40: #{st_gcn_forward.1} parent=35 // pred_fallthru
        _
    $region36: #{st_gcn_forward.1} parent=5 // pred_fallthru
      _
    %p211 = scmp.le.s32.totalorder 1, %s12
    %p212 = scmp.lt.s32.totalorder %s12, 3
    %p213 = pnand %p211, %p212
    %p214 = pneg %p213
    // Predicated region
    $region41: #{st_gcn_forward.1} parent=5 // pred_check
      _
    $region42: #{st_gcn_forward.1} parent=5 // pred_check_branch
      %216 = sbr.rel (%p213) target = $region44
    $region43: #{st_gcn_forward.1} parent=5 // pred_region
      %s217 = ssub.s32 %s12, 1
      %p218 = scmp.lt.s32.totalorder %s17, 1
      %s219 = scalar_select %p218, %s17, 1
      %s220 = smul.addr %s219, 16
      %s221 = smul.addr %s220, 4
      %s222 = scalar_lea.vmem %s0, %s221
      %p223 = pneg %p38
      %p224 = pneg %p35
      %p225 = pneg %p59
      %p226 = pneg %p56
      %p227 = pneg %p80
      %p228 = pneg %p77
      %p229 = pneg %p101
      %p230 = pneg %p98
      %p231 = pneg %p122
      %p232 = pneg %p119
      %p233 = pneg %p143
      %p234 = pneg %p140
      %p235 = pneg %p169
      %p236 = pneg %p166
      %p237 = scmp.lt.s32.totalorder %s17, 1
      %s238 = scalar_select %p237, %s17, 1
      %s239 = smul.addr %s238, 16
      %s240 = smul.addr %s239, 8
      %s241 = scalar_lea.vmem %s6, %s240
      %p242 = scmp.lt.s32.totalorder %s17, 1
      %s243 = scalar_select %p242, %s17, 1
      %s244 = smul.addr %s243, 16
      %s245 = smul.addr %s244, 4
      %s246 = scalar_lea.vmem %s0, %s245
      %p247 = scmp.lt.s32.totalorder %s17, 1
      %s248 = scalar_select %p247, %s17, 1
      %s249 = smul.addr %s248, 16
      %s250 = smul.addr %s249, 8
      %s251 = scalar_lea.vmem %s6, %s250
      %v253 = vld [vmem:[%s246] sm:$0xf]
      %v254 = vld [vmem:[%s246 + $0x4] sm:$0xf]
      %v255 = vld [vmem:[%s246 + $0x8] sm:$0xf]
      %v256 = vld [vmem:[%s246 + $0xc] sm:$0xf]
      %v257 = vld [vmem:[%s246 + $0x10] sm:$0xf]
      %v258 = vld [vmem:[%s246 + $0x14] sm:$0xf]
      %v259 = vld [vmem:[%s246 + $0x18] sm:$0xf]
      %v260 = vld [vmem:[%s246 + $0x1c] sm:$0xf]
      %v261 = vld [vmem:[%s246 + $0x20] sm:$0xf]
      %v262 = vld [vmem:[%s246 + $0x24] sm:$0xf]
      %v263 = vld [vmem:[%s246 + $0x28] sm:$0xf]
      %v264 = vld [vmem:[%s246 + $0x2c] sm:$0xf]
      %v265 = vld [vmem:[%s246 + $0x30] sm:$0xf]
      %v266 = vld [vmem:[%s246 + $0x34] sm:$0xf]
      %v267 = vld [vmem:[%s246 + $0x38] sm:$0xf]
      %v268 = vld [vmem:[%s246 + $0x3c] sm:$0xf]
      %v269 = vcombine.low %v253, %v257
      %v271 = vunpack.c.l.s4 1983009808
      %v272 = vunpack.c.0.s8 %v271
      %v273 = vlaneseq
      %v274 = vshrl.u32 %v273, 7
      %v275 = vsub.s32 %v272, %v274
      %v276 = vrot.slane %v269, %v275
      %v277 = vcombine.low %v255, %v259
      %v279 = vunpack.c.l.s4 1983009808
      %v280 = vunpack.c.0.s8 %v279
      %v281 = vlaneseq
      %v282 = vshrl.u32 %v281, 7
      %v283 = vsub.s32 %v280, %v282
      %v284 = vrot.slane %v277, %v283
      %v285 = vcombine.low %v276, %v284
      %v286 = vcombine.high %v276, %v284
      %v288 = vunpack.c.l.s4 1934713408
      %v289 = vunpack.c.0.s8 %v288
      %v290 = vlaneseq
      %v291 = vshrl.u32 %v290, 7
      %v292 = vsub.s32 %v289, %v291
      %v293 = vrot.slane %v285, %v292
      %v295 = vunpack.c.l.s4 1934713408
      %v296 = vunpack.c.0.s8 %v295
      %v297 = vlaneseq
      %v298 = vshrl.u32 %v297, 7
      %v299 = vsub.s32 %v296, %v298
      %v300 = vrot.slane %v286, %v299
      %v301 = vcombine.high %v293, 0
      %v302 = vcombine.high %v300, 0
      %v303 = vcombine.low %v254, %v258
      %v305 = vunpack.c.l.s4 1983009808
      %v306 = vunpack.c.0.s8 %v305
      %v307 = vlaneseq
      %v308 = vshrl.u32 %v307, 7
      %v309 = vsub.s32 %v306, %v308
      %v310 = vrot.slane %v303, %v309
      %v311 = vcombine.low %v256, %v260
      %v313 = vunpack.c.l.s4 1983009808
      %v314 = vunpack.c.0.s8 %v313
      %v315 = vlaneseq
      %v316 = vshrl.u32 %v315, 7
      %v317 = vsub.s32 %v314, %v316
      %v318 = vrot.slane %v311, %v317
      %v319 = vcombine.low %v310, %v318
      %v320 = vcombine.high %v310, %v318
      %v322 = vunpack.c.l.s4 1934713408
      %v323 = vunpack.c.0.s8 %v322
      %v324 = vlaneseq
      %v325 = vshrl.u32 %v324, 7
      %v326 = vsub.s32 %v323, %v325
      %v327 = vrot.slane %v319, %v326
      %v329 = vunpack.c.l.s4 1934713408
      %v330 = vunpack.c.0.s8 %v329
      %v331 = vlaneseq
      %v332 = vshrl.u32 %v331, 7
      %v333 = vsub.s32 %v330, %v332
      %v334 = vrot.slane %v320, %v333
      %v335 = vcombine.high %v327, 0
      %v336 = vcombine.high %v334, 0
      %v337 = vcombine.low %v261, %v265
      %v339 = vunpack.c.l.s4 1983009808
      %v340 = vunpack.c.0.s8 %v339
      %v341 = vlaneseq
      %v342 = vshrl.u32 %v341, 7
      %v343 = vsub.s32 %v340, %v342
      %v344 = vrot.slane %v337, %v343
      %v345 = vcombine.low %v263, %v267
      %v347 = vunpack.c.l.s4 1983009808
      %v348 = vunpack.c.0.s8 %v347
      %v349 = vlaneseq
      %v350 = vshrl.u32 %v349, 7
      %v351 = vsub.s32 %v348, %v350
      %v352 = vrot.slane %v345, %v351
      %v353 = vcombine.low %v344, %v352
      %v354 = vcombine.high %v344, %v352
      %v356 = vunpack.c.l.s4 1934713408
      %v357 = vunpack.c.0.s8 %v356
      %v358 = vlaneseq
      %v359 = vshrl.u32 %v358, 7
      %v360 = vsub.s32 %v357, %v359
      %v361 = vrot.slane %v353, %v360
      %v363 = vunpack.c.l.s4 1934713408
      %v364 = vunpack.c.0.s8 %v363
      %v365 = vlaneseq
      %v366 = vshrl.u32 %v365, 7
      %v367 = vsub.s32 %v364, %v366
      %v368 = vrot.slane %v354, %v367
      %v369 = vcombine.high %v361, 0
      %v370 = vcombine.high %v368, 0
      %v371 = vcombine.low %v262, %v266
      %v373 = vunpack.c.l.s4 1983009808
      %v374 = vunpack.c.0.s8 %v373
      %v375 = vlaneseq
      %v376 = vshrl.u32 %v375, 7
      %v377 = vsub.s32 %v374, %v376
      %v378 = vrot.slane %v371, %v377
      %v379 = vcombine.low %v264, %v268
      %v381 = vunpack.c.l.s4 1983009808
      %v382 = vunpack.c.0.s8 %v381
      %v383 = vlaneseq
      %v384 = vshrl.u32 %v383, 7
      %v385 = vsub.s32 %v382, %v384
      %v386 = vrot.slane %v379, %v385
      %v387 = vcombine.low %v378, %v386
      %v388 = vcombine.high %v378, %v386
      %v390 = vunpack.c.l.s4 1934713408
      %v391 = vunpack.c.0.s8 %v390
      %v392 = vlaneseq
      %v393 = vshrl.u32 %v392, 7
      %v394 = vsub.s32 %v391, %v393
      %v395 = vrot.slane %v387, %v394
      %v397 = vunpack.c.l.s4 1934713408
      %v398 = vunpack.c.0.s8 %v397
      %v399 = vlaneseq
      %v400 = vshrl.u32 %v399, 7
      %v401 = vsub.s32 %v398, %v400
      %v402 = vrot.slane %v388, %v401
      %v403 = vcombine.high %v395, 0
      %v404 = vcombine.high %v402, 0
      %v407 = vpack.i.b16 %v327, %v293
      %v408 = vshrl.u32 %v293, 16
      %v409 = vshrl.u32 %v327, 16
      %v410 = vpack.i.b16 %v409, %v408
      %v413 = vpack.i.b16 %v335, %v301
      %v414 = vshrl.u32 %v301, 16
      %v415 = vshrl.u32 %v335, 16
      %v416 = vpack.i.b16 %v415, %v414
      %v419 = vpack.i.b16 %v334, %v300
      %v420 = vshrl.u32 %v300, 16
      %v421 = vshrl.u32 %v334, 16
      %v422 = vpack.i.b16 %v421, %v420
      %v425 = vpack.i.b16 %v336, %v302
      %v426 = vshrl.u32 %v302, 16
      %v427 = vshrl.u32 %v336, 16
      %v428 = vpack.i.b16 %v427, %v426
      %v431 = vpack.i.b16 %v395, %v361
      %v432 = vshrl.u32 %v361, 16
      %v433 = vshrl.u32 %v395, 16
      %v434 = vpack.i.b16 %v433, %v432
      %v437 = vpack.i.b16 %v403, %v369
      %v438 = vshrl.u32 %v369, 16
      %v439 = vshrl.u32 %v403, 16
      %v440 = vpack.i.b16 %v439, %v438
      %v443 = vpack.i.b16 %v402, %v368
      %v444 = vshrl.u32 %v368, 16
      %v445 = vshrl.u32 %v402, 16
      %v446 = vpack.i.b16 %v445, %v444
      %v449 = vpack.i.b16 %v404, %v370
      %v450 = vshrl.u32 %v370, 16
      %v451 = vshrl.u32 %v404, 16
      %v452 = vpack.i.b16 %v451, %v450
      %v453 = vunpack.c.l.b16 %v407
      %v454 = vunpack.c.l.b16 %v431
      %v455 = vpack.c.b16 %v454, %v453
      %v456 = vunpack.c.l.b16 %v410
      %v457 = vunpack.c.l.b16 %v434
      %v458 = vpack.c.b16 %v457, %v456
      %459 = vrot.lane.b32.xlu0 %v458, 4
      %v460 = vpop.permute.xlu0 %459
      %v461 = vunpack.c.l.b16 %v413
      %v462 = vunpack.c.l.b16 %v437
      %v463 = vpack.c.b16 %v462, %v461
      %464 = vrot.lane.b32.xlu0 %v463, 8
      %v465 = vpop.permute.xlu0 %464
      %v466 = vunpack.c.l.b16 %v416
      %v467 = vunpack.c.l.b16 %v440
      %v468 = vpack.c.b16 %v467, %v466
      %469 = vrot.lane.b32.xlu0 %v468, 12
      %v470 = vpop.permute.xlu0 %469
      %v471 = vunpack.c.l.b16 %v419
      %v472 = vunpack.c.l.b16 %v443
      %v473 = vpack.c.b16 %v472, %v471
      %474 = vrot.lane.b32.xlu0 %v473, 16
      %v475 = vpop.permute.xlu0 %474
      %v476 = vunpack.c.l.b16 %v422
      %v477 = vunpack.c.l.b16 %v446
      %v478 = vpack.c.b16 %v477, %v476
      %479 = vrot.lane.b32.xlu0 %v478, 20
      %v480 = vpop.permute.xlu0 %479
      %v481 = vunpack.c.l.b16 %v425
      %v482 = vunpack.c.l.b16 %v449
      %v483 = vpack.c.b16 %v482, %v481
      %484 = vrot.lane.b32.xlu0 %v483, 24
      %v485 = vpop.permute.xlu0 %484
      %v486 = vunpack.c.l.b16 %v428
      %v487 = vunpack.c.l.b16 %v452
      %v488 = vpack.c.b16 %v487, %v486
      %489 = vrot.lane.b32.xlu0 %v488, 28
      %v490 = vpop.permute.xlu0 %489
      %vm491 = vcmask 31744
      %v494 = vsel %vm491, %v455, %v460
      %vm495 = vcmask 64512
      %v497 = vsel %vm495, %v494, %v465
      %vm498 = vcmask 97280
      %v500 = vsel %vm498, %v497, %v470
      %vm501 = vcmask 130048
      %v503 = vsel %vm501, %v500, %v475
      %vm504 = vcmask 162816
      %v506 = vsel %vm504, %v503, %v480
      %vm507 = vcmask 195584
      %v509 = vsel %vm507, %v506, %v485
      %vm510 = vcmask 228352
      %v512 = vsel %vm510, %v509, %v490
      %v513 = vld [vmem:[%s1] sm:$0xf]
      %v514 = vld [vmem:[%s1 + $0x4] sm:$0xf]
      %v515 = vld [vmem:[%s1 + $0x8] sm:$0xf]
      %v516 = vld [vmem:[%s1 + $0xc] sm:$0xf]
      %v517 = vld [vmem:[%s2] sm:$0x1]
      %v519 = vlaneseq
      %v520 = vshrl.u32 %v519, 7
      %v521 = vsub.s32 0, %v520
      %v522 = vrot.slane %v517, %v521
      %v528 = vunpack.c.l.b16 %v513
      %v529 = vunpack.c.l.b16 %v514
      %v530 = vunpack.c.l.b16 %v515
      %v531 = vunpack.c.l.b16 %v516
      %v532 = vpack.c.b16 %v529, %v528
      %v533 = vpack.c.b16 %v531, %v530
      %vm536 = vcmask 261120
      %v537 = vsel %vm536, %v512, 0
      %539 = vmatprep.subr.bf16.mxu0 0
      %540 = vmatpush1.bf16.msra.mxu0 %v532
      %541 = vmatprep.subr.bf16.mxu0 0
      %542 = vmatpush1.bf16.msra.mxu0 %v533
      %543 = vmatprep.subr.bf16.mxu0 0
      %544 = vmatpush1.bf16.msra.mxu0 0
      %545 = vmatprep.subr.bf16.mxu0 0
      %546 = vmatpush1.bf16.msra.mxu0 0
      %547 = vmatprep.subr.bf16.mxu0 0
      %548 = vmatpush1.bf16.msra.mxu0 0
      %549 = vmatprep.subr.bf16.mxu0 0
      %550 = vmatpush1.bf16.msra.mxu0 0
      %551 = vmatprep.subr.bf16.mxu0 0
      %552 = vmatpush1.bf16.msra.mxu0 0
      %553 = vmatprep.subr.bf16.mxu0 0
      %554 = vmatpush1.bf16.msra.mxu0 0
      %555 = vmatprep.subr.bf16.mxu0 0
      %556 = vmatpush1.bf16.msra.mxu0 0
      %557 = vmatprep.subr.bf16.mxu0 0
      %558 = vmatpush1.bf16.msra.mxu0 0
      %559 = vmatprep.subr.bf16.mxu0 0
      %560 = vmatpush1.bf16.msra.mxu0 0
      %561 = vmatprep.subr.bf16.mxu0 0
      %562 = vmatpush1.bf16.msra.mxu0 0
      %563 = vmatprep.subr.bf16.mxu0 0
      %564 = vmatpush1.bf16.msra.mxu0 0
      %565 = vmatprep.subr.bf16.mxu0 0
      %566 = vmatpush1.bf16.msra.mxu0 0
      %567 = vmatprep.subr.bf16.mxu0 0
      %568 = vmatpush1.bf16.msra.mxu0 0
      %569 = vmatprep.subr.bf16.mxu0 0
      %570 = vmatpush1.bf16.msra.mxu0 0
      %571 = vmatprep.mubr.bf16.mxu0 0
      %572 = vmatmul.mubr.bf16.gmra.mrb[0].mxu0 %v537
      %v573 = vpop.f32.mrb[0].mxu0
      %v574 = vadd.f32 %v522, %v573
      %v575 = vpop.f32.mrb[0].mxu0
      %v576 = vpop.f32.mrb[0].mxu0
      %v577 = vadd.f32 %v522, %v576
      %v578 = vpop.f32.mrb[0].mxu0
      %579 = vdwg.mxu0
      %v580 = vld [vmem:[%s3] sm:$0x3]
      %v581 = vld [vmem:[%s5] sm:$0x1]
      %v583 = vlaneseq
      %v584 = vshrl.u32 %v583, 7
      %v585 = vsub.s32 0, %v584
      %v586 = vrot.slane %v581, %v585
      %v604 = vunpack.c.l.b16 %v253
      %v605 = vunpack.c.l.b16 %v254
      %v606 = vunpack.c.l.b16 %v255
      %v607 = vunpack.c.l.b16 %v256
      %v608 = vunpack.c.l.b16 %v257
      %v609 = vunpack.c.l.b16 %v258
      %v610 = vunpack.c.l.b16 %v259
      %v611 = vunpack.c.l.b16 %v260
      %v612 = vunpack.c.l.b16 %v261
      %v613 = vunpack.c.l.b16 %v262
      %v614 = vunpack.c.l.b16 %v263
      %v615 = vunpack.c.l.b16 %v264
      %v616 = vunpack.c.l.b16 %v265
      %v617 = vunpack.c.l.b16 %v266
      %v618 = vunpack.c.l.b16 %v267
      %v619 = vunpack.c.l.b16 %v268
      %v620 = vpack.c.b16 %v605, %v604
      %v621 = vpack.c.b16 %v607, %v606
      %v622 = vpack.c.b16 %v609, %v608
      %v623 = vpack.c.b16 %v611, %v610
      %v624 = vpack.c.b16 %v613, %v612
      %v625 = vpack.c.b16 %v615, %v614
      %v626 = vpack.c.b16 %v617, %v616
      %v627 = vpack.c.b16 %v619, %v618
      %v629 = vsel %vm491, %v620, 0
      %v632 = vsel %vm491, %v621, 0
      %v635 = vsel %vm491, %v622, 0
      %v638 = vsel %vm491, %v623, 0
      %v641 = vsel %vm491, %v624, 0
      %v644 = vsel %vm491, %v625, 0
      %v647 = vsel %vm491, %v626, 0
      %v650 = vsel %vm491, %v627, 0
      %vm652 = vcmask 1041408
      %v654 = vsel %vm652, %v580, 0
      %656 = vmatprep.subr.bf16.mxu0 0
      %657 = vmatpush1.bf16.msra.mxu0 %v654
      %658 = vmatprep.subr.bf16.mxu0 0
      %659 = vmatpush1.bf16.msra.mxu0 0
      %660 = vmatprep.subr.bf16.mxu0 0
      %661 = vmatpush1.bf16.msra.mxu0 0
      %662 = vmatprep.subr.bf16.mxu0 0
      %663 = vmatpush1.bf16.msra.mxu0 0
      %664 = vmatprep.subr.bf16.mxu0 0
      %665 = vmatpush1.bf16.msra.mxu0 0
      %666 = vmatprep.subr.bf16.mxu0 0
      %667 = vmatpush1.bf16.msra.mxu0 0
      %668 = vmatprep.subr.bf16.mxu0 0
      %669 = vmatpush1.bf16.msra.mxu0 0
      %670 = vmatprep.subr.bf16.mxu0 0
      %671 = vmatpush1.bf16.msra.mxu0 0
      %672 = vmatprep.subr.bf16.mxu0 0
      %673 = vmatpush1.bf16.msra.mxu0 0
      %674 = vmatprep.subr.bf16.mxu0 0
      %675 = vmatpush1.bf16.msra.mxu0 0
      %676 = vmatprep.subr.bf16.mxu0 0
      %677 = vmatpush1.bf16.msra.mxu0 0
      %678 = vmatprep.subr.bf16.mxu0 0
      %679 = vmatpush1.bf16.msra.mxu0 0
      %680 = vmatprep.subr.bf16.mxu0 0
      %681 = vmatpush1.bf16.msra.mxu0 0
      %682 = vmatprep.subr.bf16.mxu0 0
      %683 = vmatpush1.bf16.msra.mxu0 0
      %684 = vmatprep.subr.bf16.mxu0 0
      %685 = vmatpush1.bf16.msra.mxu0 0
      %686 = vmatprep.subr.bf16.mxu0 0
      %687 = vmatpush1.bf16.msra.mxu0 0
      %688 = vmatprep.mubr.bf16.mxu0 0
      %689 = vmatmul.mubr.bf16.gmra.mrb[0].mxu0 %v629
      %v690 = vpop.f32.mrb[0].mxu0
      %v691 = vadd.f32 %v586, %v690
      %v692 = vpop.f32.mrb[0].mxu0
      %v693 = vpop.f32.mrb[0].mxu0
      %v694 = vadd.f32 %v586, %v693
      %v695 = vpop.f32.mrb[0].mxu0
      %696 = vmatprep.mubr.bf16.mxu0 0
      %697 = vmatmul.mubr.bf16.gmra.mrb[0].mxu0 %v632
      %v698 = vpop.f32.mrb[0].mxu0
      %v699 = vadd.f32 %v586, %v698
      %v700 = vpop.f32.mrb[0].mxu0
      %v701 = vpop.f32.mrb[0].mxu0
      %v702 = vadd.f32 %v586, %v701
      %v703 = vpop.f32.mrb[0].mxu0
      %704 = vmatprep.mubr.bf16.mxu0 0
      %705 = vmatmul.mubr.bf16.gmra.mrb[0].mxu0 %v635
      %v706 = vpop.f32.mrb[0].mxu0
      %v707 = vadd.f32 %v586, %v706
      %v708 = vpop.f32.mrb[0].mxu0
      %v709 = vpop.f32.mrb[0].mxu0
      %v710 = vadd.f32 %v586, %v709
      %v711 = vpop.f32.mrb[0].mxu0
      %712 = vmatprep.mubr.bf16.mxu0 0
      %713 = vmatmul.mubr.bf16.gmra.mrb[0].mxu0 %v638
      %v714 = vpop.f32.mrb[0].mxu0
      %v715 = vadd.f32 %v586, %v714
      %v716 = vpop.f32.mrb[0].mxu0
      %v717 = vpop.f32.mrb[0].mxu0
      %v718 = vadd.f32 %v586, %v717
      %v719 = vpop.f32.mrb[0].mxu0
      %720 = vmatprep.mubr.bf16.mxu0 0
      %721 = vmatmul.mubr.bf16.gmra.mrb[0].mxu0 %v641
      %v722 = vpop.f32.mrb[0].mxu0
      %v723 = vadd.f32 %v586, %v722
      %v724 = vpop.f32.mrb[0].mxu0
      %v725 = vpop.f32.mrb[0].mxu0
      %v726 = vadd.f32 %v586, %v725
      %v727 = vpop.f32.mrb[0].mxu0
      %728 = vmatprep.mubr.bf16.mxu0 0
      %729 = vmatmul.mubr.bf16.gmra.mrb[0].mxu0 %v644
      %v730 = vpop.f32.mrb[0].mxu0
      %v731 = vadd.f32 %v586, %v730
      %v732 = vpop.f32.mrb[0].mxu0
      %v733 = vpop.f32.mrb[0].mxu0
      %v734 = vadd.f32 %v586, %v733
      %v735 = vpop.f32.mrb[0].mxu0
      %736 = vmatprep.mubr.bf16.mxu0 0
      %737 = vmatmul.mubr.bf16.gmra.mrb[0].mxu0 %v647
      %v738 = vpop.f32.mrb[0].mxu0
      %v739 = vadd.f32 %v586, %v738
      %v740 = vpop.f32.mrb[0].mxu0
      %v741 = vpop.f32.mrb[0].mxu0
      %v742 = vadd.f32 %v586, %v741
      %v743 = vpop.f32.mrb[0].mxu0
      %744 = vmatprep.mubr.bf16.mxu0 0
      %745 = vmatmul.mubr.bf16.gmra.mrb[0].mxu0 %v650
      %v746 = vpop.f32.mrb[0].mxu0
      %v747 = vadd.f32 %v586, %v746
      %v748 = vpop.f32.mrb[0].mxu0
      %v749 = vpop.f32.mrb[0].mxu0
      %v750 = vadd.f32 %v586, %v749
      %v751 = vpop.f32.mrb[0].mxu0
      %752 = vdwg.mxu0
      %755 = vrot.lane.b32.xlu0 %v574, 120
      %v756 = vpop.permute.xlu0 %755
      %757 = vrot.lane.b32.xlu0 %v577, 120
      %v758 = vpop.permute.xlu0 %757
      %761 = vrot.lane.b32.xlu0 %v574, 112
      %v762 = vpop.permute.xlu0 %761
      %763 = vrot.lane.b32.xlu0 %v577, 112
      %v764 = vpop.permute.xlu0 %763
      %767 = vrot.lane.b32.xlu0 %v574, 104
      %v768 = vpop.permute.xlu0 %767
      %769 = vrot.lane.b32.xlu0 %v577, 104
      %v770 = vpop.permute.xlu0 %769
      %773 = vrot.lane.b32.xlu0 %v574, 96
      %v774 = vpop.permute.xlu0 %773
      %775 = vrot.lane.b32.xlu0 %v577, 96
      %v776 = vpop.permute.xlu0 %775
      %779 = vrot.lane.b32.xlu0 %v574, 88
      %v780 = vpop.permute.xlu0 %779
      %781 = vrot.lane.b32.xlu0 %v577, 88
      %v782 = vpop.permute.xlu0 %781
      %785 = vrot.lane.b32.xlu0 %v574, 80
      %v786 = vpop.permute.xlu0 %785
      %787 = vrot.lane.b32.xlu0 %v577, 80
      %v788 = vpop.permute.xlu0 %787
      %791 = vrot.lane.b32.xlu0 %v574, 72
      %v792 = vpop.permute.xlu0 %791
      %793 = vrot.lane.b32.xlu0 %v577, 72
      %v794 = vpop.permute.xlu0 %793
      %v797 = vcombine.low %v574, %v762
      %v798 = vcombine.high %v574, %v762
      %v800 = vunpack.c.l.s4 1983009808
      %v801 = vunpack.c.0.s8 %v800
      %v802 = vlaneseq
      %v803 = vshrl.u32 %v802, 7
      %v804 = vsub.s32 %v801, %v803
      %v805 = vrot.slane %v797, %v804
      %v807 = vunpack.c.l.s4 1983009808
      %v808 = vunpack.c.0.s8 %v807
      %v809 = vlaneseq
      %v810 = vshrl.u32 %v809, 7
      %v811 = vsub.s32 %v808, %v810
      %v812 = vrot.slane %v798, %v811
      %v813 = vcombine.low %v756, %v768
      %v814 = vcombine.high %v756, %v768
      %v816 = vunpack.c.l.s4 1983009808
      %v817 = vunpack.c.0.s8 %v816
      %v818 = vlaneseq
      %v819 = vshrl.u32 %v818, 7
      %v820 = vsub.s32 %v817, %v819
      %v821 = vrot.slane %v813, %v820
      %v823 = vunpack.c.l.s4 1983009808
      %v824 = vunpack.c.0.s8 %v823
      %v825 = vlaneseq
      %v826 = vshrl.u32 %v825, 7
      %v827 = vsub.s32 %v824, %v826
      %v828 = vrot.slane %v814, %v827
      %v829 = vcombine.low %v774, %v786
      %v830 = vcombine.high %v774, %v786
      %v832 = vunpack.c.l.s4 1983009808
      %v833 = vunpack.c.0.s8 %v832
      %v834 = vlaneseq
      %v835 = vshrl.u32 %v834, 7
      %v836 = vsub.s32 %v833, %v835
      %v837 = vrot.slane %v829, %v836
      %v839 = vunpack.c.l.s4 1983009808
      %v840 = vunpack.c.0.s8 %v839
      %v841 = vlaneseq
      %v842 = vshrl.u32 %v841, 7
      %v843 = vsub.s32 %v840, %v842
      %v844 = vrot.slane %v830, %v843
      %v845 = vcombine.low %v780, %v792
      %v846 = vcombine.high %v780, %v792
      %v848 = vunpack.c.l.s4 1983009808
      %v849 = vunpack.c.0.s8 %v848
      %v850 = vlaneseq
      %v851 = vshrl.u32 %v850, 7
      %v852 = vsub.s32 %v849, %v851
      %v853 = vrot.slane %v845, %v852
      %v855 = vunpack.c.l.s4 1983009808
      %v856 = vunpack.c.0.s8 %v855
      %v857 = vlaneseq
      %v858 = vshrl.u32 %v857, 7
      %v859 = vsub.s32 %v856, %v858
      %v860 = vrot.slane %v846, %v859
      %v861 = vcombine.low %v805, %v821
      %v862 = vcombine.high %v805, %v821
      %v864 = vunpack.c.l.s4 1934713408
      %v865 = vunpack.c.0.s8 %v864
      %v866 = vlaneseq
      %v867 = vshrl.u32 %v866, 7
      %v868 = vsub.s32 %v865, %v867
      %v869 = vrot.slane %v861, %v868
      %v871 = vunpack.c.l.s4 1934713408
      %v872 = vunpack.c.0.s8 %v871
      %v873 = vlaneseq
      %v874 = vshrl.u32 %v873, 7
      %v875 = vsub.s32 %v872, %v874
      %v876 = vrot.slane %v862, %v875
      %v877 = vcombine.low %v812, %v828
      %v878 = vcombine.high %v812, %v828
      %v880 = vunpack.c.l.s4 1934713408
      %v881 = vunpack.c.0.s8 %v880
      %v882 = vlaneseq
      %v883 = vshrl.u32 %v882, 7
      %v884 = vsub.s32 %v881, %v883
      %v885 = vrot.slane %v877, %v884
      %v887 = vunpack.c.l.s4 1934713408
      %v888 = vunpack.c.0.s8 %v887
      %v889 = vlaneseq
      %v890 = vshrl.u32 %v889, 7
      %v891 = vsub.s32 %v888, %v890
      %v892 = vrot.slane %v878, %v891
      %v893 = vcombine.low %v837, %v853
      %v894 = vcombine.high %v837, %v853
      %v896 = vunpack.c.l.s4 1934713408
      %v897 = vunpack.c.0.s8 %v896
      %v898 = vlaneseq
      %v899 = vshrl.u32 %v898, 7
      %v900 = vsub.s32 %v897, %v899
      %v901 = vrot.slane %v893, %v900
      %v903 = vunpack.c.l.s4 1934713408
      %v904 = vunpack.c.0.s8 %v903
      %v905 = vlaneseq
      %v906 = vshrl.u32 %v905, 7
      %v907 = vsub.s32 %v904, %v906
      %v908 = vrot.slane %v894, %v907
      %v909 = vcombine.low %v844, %v860
      %v910 = vcombine.high %v844, %v860
      %v912 = vunpack.c.l.s4 1934713408
      %v913 = vunpack.c.0.s8 %v912
      %v914 = vlaneseq
      %v915 = vshrl.u32 %v914, 7
      %v916 = vsub.s32 %v913, %v915
      %v917 = vrot.slane %v909, %v916
      %v919 = vunpack.c.l.s4 1934713408
      %v920 = vunpack.c.0.s8 %v919
      %v921 = vlaneseq
      %v922 = vshrl.u32 %v921, 7
      %v923 = vsub.s32 %v920, %v922
      %v924 = vrot.slane %v910, %v923
      %v925 = vcombine.low %v869, %v901
      %v926 = vcombine.high %v869, %v901
      %v927 = vcombine.low %v876, %v908
      %v928 = vcombine.high %v876, %v908
      %v929 = vcombine.low %v885, %v917
      %v930 = vcombine.high %v885, %v917
      %v931 = vcombine.low %v892, %v924
      %v932 = vcombine.high %v892, %v924
      %v933 = vcombine.low %v577, %v764
      %v934 = vcombine.high %v577, %v764
      %v936 = vunpack.c.l.s4 1983009808
      %v937 = vunpack.c.0.s8 %v936
      %v938 = vlaneseq
      %v939 = vshrl.u32 %v938, 7
      %v940 = vsub.s32 %v937, %v939
      %v941 = vrot.slane %v933, %v940
      %v943 = vunpack.c.l.s4 1983009808
      %v944 = vunpack.c.0.s8 %v943
      %v945 = vlaneseq
      %v946 = vshrl.u32 %v945, 7
      %v947 = vsub.s32 %v944, %v946
      %v948 = vrot.slane %v934, %v947
      %v949 = vcombine.low %v758, %v770
      %v950 = vcombine.high %v758, %v770
      %v952 = vunpack.c.l.s4 1983009808
      %v953 = vunpack.c.0.s8 %v952
      %v954 = vlaneseq
      %v955 = vshrl.u32 %v954, 7
      %v956 = vsub.s32 %v953, %v955
      %v957 = vrot.slane %v949, %v956
      %v959 = vunpack.c.l.s4 1983009808
      %v960 = vunpack.c.0.s8 %v959
      %v961 = vlaneseq
      %v962 = vshrl.u32 %v961, 7
      %v963 = vsub.s32 %v960, %v962
      %v964 = vrot.slane %v950, %v963
      %v965 = vcombine.low %v776, %v788
      %v966 = vcombine.high %v776, %v788
      %v968 = vunpack.c.l.s4 1983009808
      %v969 = vunpack.c.0.s8 %v968
      %v970 = vlaneseq
      %v971 = vshrl.u32 %v970, 7
      %v972 = vsub.s32 %v969, %v971
      %v973 = vrot.slane %v965, %v972
      %v975 = vunpack.c.l.s4 1983009808
      %v976 = vunpack.c.0.s8 %v975
      %v977 = vlaneseq
      %v978 = vshrl.u32 %v977, 7
      %v979 = vsub.s32 %v976, %v978
      %v980 = vrot.slane %v966, %v979
      %v981 = vcombine.low %v782, %v794
      %v982 = vcombine.high %v782, %v794
      %v984 = vunpack.c.l.s4 1983009808
      %v985 = vunpack.c.0.s8 %v984
      %v986 = vlaneseq
      %v987 = vshrl.u32 %v986, 7
      %v988 = vsub.s32 %v985, %v987
      %v989 = vrot.slane %v981, %v988
      %v991 = vunpack.c.l.s4 1983009808
      %v992 = vunpack.c.0.s8 %v991
      %v993 = vlaneseq
      %v994 = vshrl.u32 %v993, 7
      %v995 = vsub.s32 %v992, %v994
      %v996 = vrot.slane %v982, %v995
      %v997 = vcombine.low %v941, %v957
      %v998 = vcombine.high %v941, %v957
      %v1000 = vunpack.c.l.s4 1934713408
      %v1001 = vunpack.c.0.s8 %v1000
      %v1002 = vlaneseq
      %v1003 = vshrl.u32 %v1002, 7
      %v1004 = vsub.s32 %v1001, %v1003
      %v1005 = vrot.slane %v997, %v1004
      %v1007 = vunpack.c.l.s4 1934713408
      %v1008 = vunpack.c.0.s8 %v1007
      %v1009 = vlaneseq
      %v1010 = vshrl.u32 %v1009, 7
      %v1011 = vsub.s32 %v1008, %v1010
      %v1012 = vrot.slane %v998, %v1011
      %v1013 = vcombine.low %v948, %v964
      %v1014 = vcombine.high %v948, %v964
      %v1016 = vunpack.c.l.s4 1934713408
      %v1017 = vunpack.c.0.s8 %v1016
      %v1018 = vlaneseq
      %v1019 = vshrl.u32 %v1018, 7
      %v1020 = vsub.s32 %v1017, %v1019
      %v1021 = vrot.slane %v1013, %v1020
      %v1023 = vunpack.c.l.s4 1934713408
      %v1024 = vunpack.c.0.s8 %v1023
      %v1025 = vlaneseq
      %v1026 = vshrl.u32 %v1025, 7
      %v1027 = vsub.s32 %v1024, %v1026
      %v1028 = vrot.slane %v1014, %v1027
      %v1029 = vcombine.low %v973, %v989
      %v1030 = vcombine.high %v973, %v989
      %v1032 = vunpack.c.l.s4 1934713408
      %v1033 = vunpack.c.0.s8 %v1032
      %v1034 = vlaneseq
      %v1035 = vshrl.u32 %v1034, 7
      %v1036 = vsub.s32 %v1033, %v1035
      %v1037 = vrot.slane %v1029, %v1036
      %v1039 = vunpack.c.l.s4 1934713408
      %v1040 = vunpack.c.0.s8 %v1039
      %v1041 = vlaneseq
      %v1042 = vshrl.u32 %v1041, 7
      %v1043 = vsub.s32 %v1040, %v1042
      %v1044 = vrot.slane %v1030, %v1043
      %v1045 = vcombine.low %v980, %v996
      %v1046 = vcombine.high %v980, %v996
      %v1048 = vunpack.c.l.s4 1934713408
      %v1049 = vunpack.c.0.s8 %v1048
      %v1050 = vlaneseq
      %v1051 = vshrl.u32 %v1050, 7
      %v1052 = vsub.s32 %v1049, %v1051
      %v1053 = vrot.slane %v1045, %v1052
      %v1055 = vunpack.c.l.s4 1934713408
      %v1056 = vunpack.c.0.s8 %v1055
      %v1057 = vlaneseq
      %v1058 = vshrl.u32 %v1057, 7
      %v1059 = vsub.s32 %v1056, %v1058
      %v1060 = vrot.slane %v1046, %v1059
      %v1061 = vcombine.low %v1005, %v1037
      %v1062 = vcombine.high %v1005, %v1037
      %v1063 = vcombine.low %v1012, %v1044
      %v1064 = vcombine.high %v1012, %v1044
      %v1065 = vcombine.low %v1021, %v1053
      %v1066 = vcombine.high %v1021, %v1053
      %v1067 = vcombine.low %v1028, %v1060
      %v1068 = vcombine.high %v1028, %v1060
      %v1069 = vpack.c.bf16 %v925, %v925
      %v1070 = vpack.c.bf16 %v926, %v926
      %v1071 = vpack.c.bf16 %v927, %v927
      %v1072 = vpack.c.bf16 %v928, %v928
      %v1073 = vpack.c.bf16 %v929, %v929
      %v1074 = vpack.c.bf16 %v930, %v930
      %v1075 = vpack.c.bf16 %v931, %v931
      %v1076 = vpack.c.bf16 %v932, %v932
      %v1077 = vpack.c.bf16 %v1061, %v1061
      %v1078 = vpack.c.bf16 %v1062, %v1062
      %v1079 = vpack.c.bf16 %v1063, %v1063
      %v1080 = vpack.c.bf16 %v1064, %v1064
      %v1081 = vpack.c.bf16 %v1065, %v1065
      %v1082 = vpack.c.bf16 %v1066, %v1066
      %v1083 = vpack.c.bf16 %v1067, %v1067
      %v1084 = vpack.c.bf16 %v1068, %v1068
      %v1085 = vld [vmem:[%s4] sm:$0xf]
      %v1102 = vunpack.c.l.b16 0
      %v1103 = vunpack.c.l.b16 %v1069
      %v1104 = vunpack.c.l.b16 %v1070
      %v1105 = vunpack.c.l.b16 %v1071
      %v1106 = vunpack.c.l.b16 %v1072
      %v1107 = vunpack.c.l.b16 %v1073
      %v1108 = vunpack.c.l.b16 %v1074
      %v1109 = vunpack.c.l.b16 %v1075
      %v1110 = vunpack.c.l.b16 %v1076
      %v1111 = vunpack.c.l.b16 %v1077
      %v1112 = vunpack.c.l.b16 %v1078
      %v1113 = vunpack.c.l.b16 %v1079
      %v1114 = vunpack.c.l.b16 %v1080
      %v1115 = vunpack.c.l.b16 %v1081
      %v1116 = vunpack.c.l.b16 %v1082
      %v1117 = vunpack.c.l.b16 %v1083
      %v1118 = vpack.c.b16 %v1103, %v1102
      %v1119 = vpack.c.b16 %v1105, %v1104
      %v1120 = vpack.c.b16 %v1107, %v1106
      %v1121 = vpack.c.b16 %v1109, %v1108
      %v1122 = vpack.c.b16 %v1111, %v1110
      %v1123 = vpack.c.b16 %v1113, %v1112
      %v1124 = vpack.c.b16 %v1115, %v1114
      %v1125 = vpack.c.b16 %v1117, %v1116
      %v1127 = vsel %vm495, %v1118, 0
      %v1130 = vsel %vm495, %v1119, 0
      %v1133 = vsel %vm495, %v1120, 0
      %v1136 = vsel %vm495, %v1121, 0
      %v1139 = vsel %vm495, %v1122, 0
      %v1142 = vsel %vm495, %v1123, 0
      %v1145 = vsel %vm495, %v1124, 0
      %v1148 = vsel %vm495, %v1125, 0
      %vm1150 = vcmask 1043456
      %v1152 = vsel %vm1150, %v1085, 0
      %1154 = vmatprep.subr.bf16.mxu0 0
      %1155 = vmatpush1.bf16.msra.mxu0 %v1152
      %1156 = vmatprep.subr.bf16.mxu0 0
      %1157 = vmatpush1.bf16.msra.mxu0 0
      %1158 = vmatprep.subr.bf16.mxu0 0
      %1159 = vmatpush1.bf16.msra.mxu0 0
      %1160 = vmatprep.subr.bf16.mxu0 0
      %1161 = vmatpush1.bf16.msra.mxu0 0
      %1162 = vmatprep.subr.bf16.mxu0 0
      %1163 = vmatpush1.bf16.msra.mxu0 0
      %1164 = vmatprep.subr.bf16.mxu0 0
      %1165 = vmatpush1.bf16.msra.mxu0 0
      %1166 = vmatprep.subr.bf16.mxu0 0
      %1167 = vmatpush1.bf16.msra.mxu0 0
      %1168 = vmatprep.subr.bf16.mxu0 0
      %1169 = vmatpush1.bf16.msra.mxu0 0
      %1170 = vmatprep.subr.bf16.mxu0 0
      %1171 = vmatpush1.bf16.msra.mxu0 0
      %1172 = vmatprep.subr.bf16.mxu0 0
      %1173 = vmatpush1.bf16.msra.mxu0 0
      %1174 = vmatprep.subr.bf16.mxu0 0
      %1175 = vmatpush1.bf16.msra.mxu0 0
      %1176 = vmatprep.subr.bf16.mxu0 0
      %1177 = vmatpush1.bf16.msra.mxu0 0
      %1178 = vmatprep.subr.bf16.mxu0 0
      %1179 = vmatpush1.bf16.msra.mxu0 0
      %1180 = vmatprep.subr.bf16.mxu0 0
      %1181 = vmatpush1.bf16.msra.mxu0 0
      %1182 = vmatprep.subr.bf16.mxu0 0
      %1183 = vmatpush1.bf16.msra.mxu0 0
      %1184 = vmatprep.subr.bf16.mxu0 0
      %1185 = vmatpush1.bf16.msra.mxu0 0
      %1186 = vmatprep.mubr.bf16.mxu0 0
      %1187 = vmatmul.mubr.bf16.gmra.mrb[0].mxu0 %v1127
      %v1188 = vpop.f32.mrb[0].mxu0
      %v1189 = vadd.f32 0.0, %v1188
      %v1190 = vpop.f32.mrb[0].mxu0
      %v1191 = vpop.f32.mrb[0].mxu0
      %v1192 = vadd.f32 0.0, %v1191
      %v1193 = vpop.f32.mrb[0].mxu0
      %1194 = vmatprep.mubr.bf16.mxu0 0
      %1195 = vmatmul.mubr.bf16.gmra.mrb[0].mxu0 %v1130
      %v1196 = vpop.f32.mrb[0].mxu0
      %v1197 = vadd.f32 0.0, %v1196
      %v1198 = vpop.f32.mrb[0].mxu0
      %v1199 = vpop.f32.mrb[0].mxu0
      %v1200 = vadd.f32 0.0, %v1199
      %v1201 = vpop.f32.mrb[0].mxu0
      %1202 = vmatprep.mubr.bf16.mxu0 0
      %1203 = vmatmul.mubr.bf16.gmra.mrb[0].mxu0 %v1133
      %v1204 = vpop.f32.mrb[0].mxu0
      %v1205 = vadd.f32 0.0, %v1204
      %v1206 = vpop.f32.mrb[0].mxu0
      %v1207 = vpop.f32.mrb[0].mxu0
      %v1208 = vadd.f32 0.0, %v1207
      %v1209 = vpop.f32.mrb[0].mxu0
      %1210 = vmatprep.mubr.bf16.mxu0 0
      %1211 = vmatmul.mubr.bf16.gmra.mrb[0].mxu0 %v1136
      %v1212 = vpop.f32.mrb[0].mxu0
      %v1213 = vadd.f32 0.0, %v1212
      %v1214 = vpop.f32.mrb[0].mxu0
      %v1215 = vpop.f32.mrb[0].mxu0
      %v1216 = vadd.f32 0.0, %v1215
      %v1217 = vpop.f32.mrb[0].mxu0
      %1218 = vmatprep.mubr.bf16.mxu0 0
      %1219 = vmatmul.mubr.bf16.gmra.mrb[0].mxu0 %v1139
      %v1220 = vpop.f32.mrb[0].mxu0
      %v1221 = vadd.f32 0.0, %v1220
      %v1222 = vpop.f32.mrb[0].mxu0
      %v1223 = vpop.f32.mrb[0].mxu0
      %v1224 = vadd.f32 0.0, %v1223
      %v1225 = vpop.f32.mrb[0].mxu0
      %1226 = vmatprep.mubr.bf16.mxu0 0
      %1227 = vmatmul.mubr.bf16.gmra.mrb[0].mxu0 %v1142
      %v1228 = vpop.f32.mrb[0].mxu0
      %v1229 = vadd.f32 0.0, %v1228
      %v1230 = vpop.f32.mrb[0].mxu0
      %v1231 = vpop.f32.mrb[0].mxu0
      %v1232 = vadd.f32 0.0, %v1231
      %v1233 = vpop.f32.mrb[0].mxu0
      %1234 = vmatprep.mubr.bf16.mxu0 0
      %1235 = vmatmul.mubr.bf16.gmra.mrb[0].mxu0 %v1145
      %v1236 = vpop.f32.mrb[0].mxu0
      %v1237 = vadd.f32 0.0, %v1236
      %v1238 = vpop.f32.mrb[0].mxu0
      %v1239 = vpop.f32.mrb[0].mxu0
      %v1240 = vadd.f32 0.0, %v1239
      %v1241 = vpop.f32.mrb[0].mxu0
      %1242 = vmatprep.mubr.bf16.mxu0 0
      %1243 = vmatmul.mubr.bf16.gmra.mrb[0].mxu0 %v1148
      %v1244 = vpop.f32.mrb[0].mxu0
      %v1245 = vadd.f32 0.0, %v1244
      %v1246 = vpop.f32.mrb[0].mxu0
      %v1247 = vpop.f32.mrb[0].mxu0
      %v1248 = vadd.f32 0.0, %v1247
      %v1249 = vpop.f32.mrb[0].mxu0
      %1250 = vdwg.mxu0
      %v1251 = vadd.f32 %v691, %v1189
      %v1252 = vadd.f32 %v694, %v1192
      %v1253 = vadd.f32 %v699, %v1197
      %v1254 = vadd.f32 %v702, %v1200
      %v1255 = vadd.f32 %v707, %v1205
      %v1256 = vadd.f32 %v710, %v1208
      %v1257 = vadd.f32 %v715, %v1213
      %v1258 = vadd.f32 %v718, %v1216
      %v1259 = vadd.f32 %v723, %v1221
      %v1260 = vadd.f32 %v726, %v1224
      %v1261 = vadd.f32 %v731, %v1229
      %v1262 = vadd.f32 %v734, %v1232
      %v1263 = vadd.f32 %v739, %v1237
      %v1264 = vadd.f32 %v742, %v1240
      %v1265 = vadd.f32 %v747, %v1245
      %v1266 = vadd.f32 %v750, %v1248
      %s1267 = scalar_lea.vmem %s4, 4
      %v1268 = vld [vmem:[%s1267] sm:$0xf]
      %v1270 = vunpack.c.l.b16 %v1084
      %v1271 = vpack.c.b16 %v1104, %v1103
      %v1272 = vpack.c.b16 %v1106, %v1105
      %v1273 = vpack.c.b16 %v1108, %v1107
      %v1274 = vpack.c.b16 %v1110, %v1109
      %v1275 = vpack.c.b16 %v1112, %v1111
      %v1276 = vpack.c.b16 %v1114, %v1113
      %v1277 = vpack.c.b16 %v1116, %v1115
      %v1278 = vpack.c.b16 %v1270, %v1117
      %v1280 = vsel %vm495, %v1271, 0
      %v1283 = vsel %vm495, %v1272, 0
      %v1286 = vsel %vm495, %v1273, 0
      %v1289 = vsel %vm495, %v1274, 0
      %v1292 = vsel %vm495, %v1275, 0
      %v1295 = vsel %vm495, %v1276, 0
      %v1298 = vsel %vm495, %v1277, 0
      %v1301 = vsel %vm495, %v1278, 0
      %v1304 = vsel %vm1150, %v1268, 0
      %1306 = vmatprep.subr.bf16.mxu0 0
      %1307 = vmatpush1.bf16.msra.mxu0 %v1304
      %1308 = vmatprep.subr.bf16.mxu0 0
      %1309 = vmatpush1.bf16.msra.mxu0 0
      %1310 = vmatprep.subr.bf16.mxu0 0
      %1311 = vmatpush1.bf16.msra.mxu0 0
      %1312 = vmatprep.subr.bf16.mxu0 0
      %1313 = vmatpush1.bf16.msra.mxu0 0
      %1314 = vmatprep.subr.bf16.mxu0 0
      %1315 = vmatpush1.bf16.msra.mxu0 0
      %1316 = vmatprep.subr.bf16.mxu0 0
      %1317 = vmatpush1.bf16.msra.mxu0 0
      %1318 = vmatprep.subr.bf16.mxu0 0
      %1319 = vmatpush1.bf16.msra.mxu0 0
      %1320 = vmatprep.subr.bf16.mxu0 0
      %1321 = vmatpush1.bf16.msra.mxu0 0
      %1322 = vmatprep.subr.bf16.mxu0 0
      %1323 = vmatpush1.bf16.msra.mxu0 0
      %1324 = vmatprep.subr.bf16.mxu0 0
      %1325 = vmatpush1.bf16.msra.mxu0 0
      %1326 = vmatprep.subr.bf16.mxu0 0
      %1327 = vmatpush1.bf16.msra.mxu0 0
      %1328 = vmatprep.subr.bf16.mxu0 0
      %1329 = vmatpush1.bf16.msra.mxu0 0
      %1330 = vmatprep.subr.bf16.mxu0 0
      %1331 = vmatpush1.bf16.msra.mxu0 0
      %1332 = vmatprep.subr.bf16.mxu0 0
      %1333 = vmatpush1.bf16.msra.mxu0 0
      %1334 = vmatprep.subr.bf16.mxu0 0
      %1335 = vmatpush1.bf16.msra.mxu0 0
      %1336 = vmatprep.subr.bf16.mxu0 0
      %1337 = vmatpush1.bf16.msra.mxu0 0
      %1338 = vmatprep.mubr.bf16.mxu0 0
      %1339 = vmatmul.mubr.bf16.gmra.mrb[0].mxu0 %v1280
      %v1340 = vpop.f32.mrb[0].mxu0
      %v1341 = vadd.f32 0.0, %v1340
      %v1342 = vpop.f32.mrb[0].mxu0
      %v1343 = vpop.f32.mrb[0].mxu0
      %v1344 = vadd.f32 0.0, %v1343
      %v1345 = vpop.f32.mrb[0].mxu0
      %1346 = vmatprep.mubr.bf16.mxu0 0
      %1347 = vmatmul.mubr.bf16.gmra.mrb[0].mxu0 %v1283
      %v1348 = vpop.f32.mrb[0].mxu0
      %v1349 = vadd.f32 0.0, %v1348
      %v1350 = vpop.f32.mrb[0].mxu0
      %v1351 = vpop.f32.mrb[0].mxu0
      %v1352 = vadd.f32 0.0, %v1351
      %v1353 = vpop.f32.mrb[0].mxu0
      %1354 = vmatprep.mubr.bf16.mxu0 0
      %1355 = vmatmul.mubr.bf16.gmra.mrb[0].mxu0 %v1286
      %v1356 = vpop.f32.mrb[0].mxu0
      %v1357 = vadd.f32 0.0, %v1356
      %v1358 = vpop.f32.mrb[0].mxu0
      %v1359 = vpop.f32.mrb[0].mxu0
      %v1360 = vadd.f32 0.0, %v1359
      %v1361 = vpop.f32.mrb[0].mxu0
      %1362 = vmatprep.mubr.bf16.mxu0 0
      %1363 = vmatmul.mubr.bf16.gmra.mrb[0].mxu0 %v1289
      %v1364 = vpop.f32.mrb[0].mxu0
      %v1365 = vadd.f32 0.0, %v1364
      %v1366 = vpop.f32.mrb[0].mxu0
      %v1367 = vpop.f32.mrb[0].mxu0
      %v1368 = vadd.f32 0.0, %v1367
      %v1369 = vpop.f32.mrb[0].mxu0
      %1370 = vmatprep.mubr.bf16.mxu0 0
      %1371 = vmatmul.mubr.bf16.gmra.mrb[0].mxu0 %v1292
      %v1372 = vpop.f32.mrb[0].mxu0
      %v1373 = vadd.f32 0.0, %v1372
      %v1374 = vpop.f32.mrb[0].mxu0
      %v1375 = vpop.f32.mrb[0].mxu0
      %v1376 = vadd.f32 0.0, %v1375
      %v1377 = vpop.f32.mrb[0].mxu0
      %1378 = vmatprep.mubr.bf16.mxu0 0
      %1379 = vmatmul.mubr.bf16.gmra.mrb[0].mxu0 %v1295
      %v1380 = vpop.f32.mrb[0].mxu0
      %v1381 = vadd.f32 0.0, %v1380
      %v1382 = vpop.f32.mrb[0].mxu0
      %v1383 = vpop.f32.mrb[0].mxu0
      %v1384 = vadd.f32 0.0, %v1383
      %v1385 = vpop.f32.mrb[0].mxu0
      %1386 = vmatprep.mubr.bf16.mxu0 0
      %1387 = vmatmul.mubr.bf16.gmra.mrb[0].mxu0 %v1298
      %v1388 = vpop.f32.mrb[0].mxu0
      %v1389 = vadd.f32 0.0, %v1388
      %v1390 = vpop.f32.mrb[0].mxu0
      %v1391 = vpop.f32.mrb[0].mxu0
      %v1392 = vadd.f32 0.0, %v1391
      %v1393 = vpop.f32.mrb[0].mxu0
      %1394 = vmatprep.mubr.bf16.mxu0 0
      %1395 = vmatmul.mubr.bf16.gmra.mrb[0].mxu0 %v1301
      %v1396 = vpop.f32.mrb[0].mxu0
      %v1397 = vadd.f32 0.0, %v1396
      %v1398 = vpop.f32.mrb[0].mxu0
      %v1399 = vpop.f32.mrb[0].mxu0
      %v1400 = vadd.f32 0.0, %v1399
      %v1401 = vpop.f32.mrb[0].mxu0
      %1402 = vdwg.mxu0
      %v1403 = vadd.f32 %v1251, %v1341
      %v1404 = vadd.f32 %v1252, %v1344
      %v1405 = vadd.f32 %v1253, %v1349
      %v1406 = vadd.f32 %v1254, %v1352
      %v1407 = vadd.f32 %v1255, %v1357
      %v1408 = vadd.f32 %v1256, %v1360
      %v1409 = vadd.f32 %v1257, %v1365
      %v1410 = vadd.f32 %v1258, %v1368
      %v1411 = vadd.f32 %v1259, %v1373
      %v1412 = vadd.f32 %v1260, %v1376
      %v1413 = vadd.f32 %v1261, %v1381
      %v1414 = vadd.f32 %v1262, %v1384
      %v1415 = vadd.f32 %v1263, %v1389
      %v1416 = vadd.f32 %v1264, %v1392
      %v1417 = vadd.f32 %v1265, %v1397
      %v1418 = vadd.f32 %v1266, %v1400
      %s1419 = scalar_lea.vmem %s4, 8
      %v1420 = vld [vmem:[%s1419] sm:$0xf]
      %v1421 = vpack.c.b16 %v1102, %v1270
      %v1423 = vsel %vm495, %v1421, 0
      %v1426 = vsel %vm1150, %v1420, 0
      %1428 = vmatprep.subr.bf16.mxu0 0
      %1429 = vmatpush1.bf16.msra.mxu0 %v1426
      %1430 = vmatprep.subr.bf16.mxu0 0
      %1431 = vmatpush1.bf16.msra.mxu0 0
      %1432 = vmatprep.subr.bf16.mxu0 0
      %1433 = vmatpush1.bf16.msra.mxu0 0
      %1434 = vmatprep.subr.bf16.mxu0 0
      %1435 = vmatpush1.bf16.msra.mxu0 0
      %1436 = vmatprep.subr.bf16.mxu0 0
      %1437 = vmatpush1.bf16.msra.mxu0 0
      %1438 = vmatprep.subr.bf16.mxu0 0
      %1439 = vmatpush1.bf16.msra.mxu0 0
      %1440 = vmatprep.subr.bf16.mxu0 0
      %1441 = vmatpush1.bf16.msra.mxu0 0
      %1442 = vmatprep.subr.bf16.mxu0 0
      %1443 = vmatpush1.bf16.msra.mxu0 0
      %1444 = vmatprep.subr.bf16.mxu0 0
      %1445 = vmatpush1.bf16.msra.mxu0 0
      %1446 = vmatprep.subr.bf16.mxu0 0
      %1447 = vmatpush1.bf16.msra.mxu0 0
      %1448 = vmatprep.subr.bf16.mxu0 0
      %1449 = vmatpush1.bf16.msra.mxu0 0
      %1450 = vmatprep.subr.bf16.mxu0 0
      %1451 = vmatpush1.bf16.msra.mxu0 0
      %1452 = vmatprep.subr.bf16.mxu0 0
      %1453 = vmatpush1.bf16.msra.mxu0 0
      %1454 = vmatprep.subr.bf16.mxu0 0
      %1455 = vmatpush1.bf16.msra.mxu0 0
      %1456 = vmatprep.subr.bf16.mxu0 0
      %1457 = vmatpush1.bf16.msra.mxu0 0
      %1458 = vmatprep.subr.bf16.mxu0 0
      %1459 = vmatpush1.bf16.msra.mxu0 0
      %1460 = vmatprep.mubr.bf16.mxu0 0
      %1461 = vmatmul.mubr.bf16.gmra.mrb[0].mxu0 %v1130
      %v1462 = vpop.f32.mrb[0].mxu0
      %v1463 = vadd.f32 0.0, %v1462
      %v1464 = vpop.f32.mrb[0].mxu0
      %v1465 = vpop.f32.mrb[0].mxu0
      %v1466 = vadd.f32 0.0, %v1465
      %v1467 = vpop.f32.mrb[0].mxu0
      %1468 = vmatprep.mubr.bf16.mxu0 0
      %1469 = vmatmul.mubr.bf16.gmra.mrb[0].mxu0 %v1133
      %v1470 = vpop.f32.mrb[0].mxu0
      %v1471 = vadd.f32 0.0, %v1470
      %v1472 = vpop.f32.mrb[0].mxu0
      %v1473 = vpop.f32.mrb[0].mxu0
      %v1474 = vadd.f32 0.0, %v1473
      %v1475 = vpop.f32.mrb[0].mxu0
      %1476 = vmatprep.mubr.bf16.mxu0 0
      %1477 = vmatmul.mubr.bf16.gmra.mrb[0].mxu0 %v1136
      %v1478 = vpop.f32.mrb[0].mxu0
      %v1479 = vadd.f32 0.0, %v1478
      %v1480 = vpop.f32.mrb[0].mxu0
      %v1481 = vpop.f32.mrb[0].mxu0
      %v1482 = vadd.f32 0.0, %v1481
      %v1483 = vpop.f32.mrb[0].mxu0
      %1484 = vmatprep.mubr.bf16.mxu0 0
      %1485 = vmatmul.mubr.bf16.gmra.mrb[0].mxu0 %v1139
      %v1486 = vpop.f32.mrb[0].mxu0
      %v1487 = vadd.f32 0.0, %v1486
      %v1488 = vpop.f32.mrb[0].mxu0
      %v1489 = vpop.f32.mrb[0].mxu0
      %v1490 = vadd.f32 0.0, %v1489
      %v1491 = vpop.f32.mrb[0].mxu0
      %1492 = vmatprep.mubr.bf16.mxu0 0
      %1493 = vmatmul.mubr.bf16.gmra.mrb[0].mxu0 %v1142
      %v1494 = vpop.f32.mrb[0].mxu0
      %v1495 = vadd.f32 0.0, %v1494
      %v1496 = vpop.f32.mrb[0].mxu0
      %v1497 = vpop.f32.mrb[0].mxu0
      %v1498 = vadd.f32 0.0, %v1497
      %v1499 = vpop.f32.mrb[0].mxu0
      %1500 = vmatprep.mubr.bf16.mxu0 0
      %1501 = vmatmul.mubr.bf16.gmra.mrb[0].mxu0 %v1145
      %v1502 = vpop.f32.mrb[0].mxu0
      %v1503 = vadd.f32 0.0, %v1502
      %v1504 = vpop.f32.mrb[0].mxu0
      %v1505 = vpop.f32.mrb[0].mxu0
      %v1506 = vadd.f32 0.0, %v1505
      %v1507 = vpop.f32.mrb[0].mxu0
      %1508 = vmatprep.mubr.bf16.mxu0 0
      %1509 = vmatmul.mubr.bf16.gmra.mrb[0].mxu0 %v1148
      %v1510 = vpop.f32.mrb[0].mxu0
      %v1511 = vadd.f32 0.0, %v1510
      %v1512 = vpop.f32.mrb[0].mxu0
      %v1513 = vpop.f32.mrb[0].mxu0
      %v1514 = vadd.f32 0.0, %v1513
      %v1515 = vpop.f32.mrb[0].mxu0
      %1516 = vmatprep.mubr.bf16.mxu0 0
      %1517 = vmatmul.mubr.bf16.gmra.mrb[0].mxu0 %v1423
      %v1518 = vpop.f32.mrb[0].mxu0
      %v1519 = vadd.f32 0.0, %v1518
      %v1520 = vpop.f32.mrb[0].mxu0
      %v1521 = vpop.f32.mrb[0].mxu0
      %v1522 = vadd.f32 0.0, %v1521
      %v1523 = vpop.f32.mrb[0].mxu0
      %1524 = vdwg.mxu0
      %v1525 = vadd.f32 %v1403, %v1463
      %v1526 = vadd.f32 %v1404, %v1466
      %v1527 = vadd.f32 %v1405, %v1471
      %v1528 = vadd.f32 %v1406, %v1474
      %v1529 = vadd.f32 %v1407, %v1479
      %v1530 = vadd.f32 %v1408, %v1482
      %v1531 = vadd.f32 %v1409, %v1487
      %v1532 = vadd.f32 %v1410, %v1490
      %v1533 = vadd.f32 %v1411, %v1495
      %v1534 = vadd.f32 %v1412, %v1498
      %v1535 = vadd.f32 %v1413, %v1503
      %v1536 = vadd.f32 %v1414, %v1506
      %v1537 = vadd.f32 %v1415, %v1511
      %v1538 = vadd.f32 %v1416, %v1514
      %v1539 = vadd.f32 %v1417, %v1519
      %v1540 = vadd.f32 %v1418, %v1522
      %vm1541 = vcmp.ge.f32.partialorder %v1525, 0.0
      %vm1542 = vcmp.ge.f32.partialorder %v1526, 0.0
      %vm1543 = vcmp.ge.f32.partialorder %v1527, 0.0
      %vm1544 = vcmp.ge.f32.partialorder %v1528, 0.0
      %vm1545 = vcmp.ge.f32.partialorder %v1529, 0.0
      %vm1546 = vcmp.ge.f32.partialorder %v1530, 0.0
      %vm1547 = vcmp.ge.f32.partialorder %v1531, 0.0
      %vm1548 = vcmp.ge.f32.partialorder %v1532, 0.0
      %vm1549 = vcmp.ge.f32.partialorder %v1533, 0.0
      %vm1550 = vcmp.ge.f32.partialorder %v1534, 0.0
      %vm1551 = vcmp.ge.f32.partialorder %v1535, 0.0
      %vm1552 = vcmp.ge.f32.partialorder %v1536, 0.0
      %vm1553 = vcmp.ge.f32.partialorder %v1537, 0.0
      %vm1554 = vcmp.ge.f32.partialorder %v1538, 0.0
      %vm1555 = vcmp.ge.f32.partialorder %v1539, 0.0
      %vm1556 = vcmp.ge.f32.partialorder %v1540, 0.0
      %v1557 = vmul.f32 %v1525, 0.2
      %v1558 = vmul.f32 %v1526, 0.2
      %v1559 = vmul.f32 %v1527, 0.2
      %v1560 = vmul.f32 %v1528, 0.2
      %v1561 = vmul.f32 %v1529, 0.2
      %v1562 = vmul.f32 %v1530, 0.2
      %v1563 = vmul.f32 %v1531, 0.2
      %v1564 = vmul.f32 %v1532, 0.2
      %v1565 = vmul.f32 %v1533, 0.2
      %v1566 = vmul.f32 %v1534, 0.2
      %v1567 = vmul.f32 %v1535, 0.2
      %v1568 = vmul.f32 %v1536, 0.2
      %v1569 = vmul.f32 %v1537, 0.2
      %v1570 = vmul.f32 %v1538, 0.2
      %v1571 = vmul.f32 %v1539, 0.2
      %v1572 = vmul.f32 %v1540, 0.2
      %v1573 = vsel %vm1541, %v1525, %v1557
      %v1574 = vsel %vm1542, %v1526, %v1558
      %v1575 = vsel %vm1543, %v1527, %v1559
      %v1576 = vsel %vm1544, %v1528, %v1560
      %v1577 = vsel %vm1545, %v1529, %v1561
      %v1578 = vsel %vm1546, %v1530, %v1562
      %v1579 = vsel %vm1547, %v1531, %v1563
      %v1580 = vsel %vm1548, %v1532, %v1564
      %v1581 = vsel %vm1549, %v1533, %v1565
      %v1582 = vsel %vm1550, %v1534, %v1566
      %v1583 = vsel %vm1551, %v1535, %v1567
      %v1584 = vsel %vm1552, %v1536, %v1568
      %v1585 = vsel %vm1553, %v1537, %v1569
      %v1586 = vsel %vm1554, %v1538, %v1570
      %v1587 = vsel %vm1555, %v1539, %v1571
      %v1588 = vsel %vm1556, %v1540, %v1572
      %1589 = vst.msk [vmem:[%s251] sm:$0xff] %vm495, %v1573
      %1590 = vst.msk [vmem:[%s251 + $0x8] sm:$0xff] %vm495, %v1574
      %1591 = vst.msk [vmem:[%s251 + $0x10] sm:$0xff] %vm495, %v1575
      %1592 = vst.msk [vmem:[%s251 + $0x18] sm:$0xff] %vm495, %v1576
      %1593 = vst.msk [vmem:[%s251 + $0x20] sm:$0xff] %vm495, %v1577
      %1594 = vst.msk [vmem:[%s251 + $0x28] sm:$0xff] %vm495, %v1578
      %1595 = vst.msk [vmem:[%s251 + $0x30] sm:$0xff] %vm495, %v1579
      %1596 = vst.msk [vmem:[%s251 + $0x38] sm:$0xff] %vm495, %v1580
      %1597 = vst.msk [vmem:[%s251 + $0x40] sm:$0xff] %vm495, %v1581
      %1598 = vst.msk [vmem:[%s251 + $0x48] sm:$0xff] %vm495, %v1582
      %1599 = vst.msk [vmem:[%s251 + $0x50] sm:$0xff] %vm495, %v1583
      %1600 = vst.msk [vmem:[%s251 + $0x58] sm:$0xff] %vm495, %v1584
      %1601 = vst.msk [vmem:[%s251 + $0x60] sm:$0xff] %vm495, %v1585
      %1602 = vst.msk [vmem:[%s251 + $0x68] sm:$0xff] %vm495, %v1586
      %1603 = vst.msk [vmem:[%s251 + $0x70] sm:$0xff] %vm495, %v1587
      %1604 = vst.msk [vmem:[%s251 + $0x78] sm:$0xff] %vm495, %v1588
      %p1605 = scmp.lt.s32.totalorder %s17, 1
      %s1606 = scalar_select %p1605, %s17, 1
      %s1607 = smul.addr %s1606, 16
      %s1608 = smul.addr %s1607, 8
      %s1609 = scalar_lea.vmem %s6, %s1608
      // Predicated region
      $region45: #{st_gcn_forward.1} parent=43 // pred_check
        %p1610 = pneg %p166
      $region46: #{st_gcn_forward.1} parent=43 // pred_check_branch
        %1612 = sbr.rel (%p1610) target = $region48
      $region47: #{st_gcn_forward.1} parent=43 // pred_region
        _
      $region48: #{st_gcn_forward.1} parent=43 // pred_fallthru
        _
    $region44: #{st_gcn_forward.1} parent=5 // pred_fallthru
      _
    %p1613 = scmp.le.s32.totalorder 2, %s12
    // Predicated region
    $region49: #{st_gcn_forward.1} parent=5 // pred_check
      %p1614 = pneg %p1613
    $region50: #{st_gcn_forward.1} parent=5 // pred_check_branch
      %1616 = sbr.rel (%p1614) target = $region52
    $region51: #{st_gcn_forward.1} parent=5 // pred_region
      %s1617 = ssub.s32 %s12, 2
      // Predicated region
      $region53: #{st_gcn_forward.1} parent=51 // pred_check
        %p1618 = pneg %p172
      $region54: #{st_gcn_forward.1} parent=51 // pred_check_branch
        %1620 = sbr.rel (%p1618) target = $region56
      $region55: #{st_gcn_forward.1} parent=51 // pred_region
        %p1621 = scmp.lt.s32.totalorder %s18, 1
        %s1622 = scalar_select %p1621, %s18, 1
        %s1623 = smul.addr %s1622, 16
        %s1624 = smul.addr %s1623, 8
        %s1625 = scalar_lea.vmem %s6, %s1624
      $region56: #{st_gcn_forward.1} parent=51 // pred_fallthru
        _
    $region52: #{st_gcn_forward.1} parent=5 // pred_fallthru
      _
  $region6: #{st_gcn_forward.1} parent=0 // loop_footer
    %s16 = sadd.s32 1, %s12
  $region7: #{st_gcn_forward.1} parent=0 // loop_footer_branch
    %11 = sbr.rel target = $region3
  $region8: #{st_gcn_forward.1} parent=0 // loop_exit
    _

</llo_original>
